<compile_context>
chip_gen: v7x
topology: tpu7x:2x2x1
jax: 0.10.0
libtpu: 0.0.40
codegen_flags: <defaults>
</compile_context>

<pallas_src>
import numpy as np
import jax
import jax.numpy as jnp
from jax.experimental import pallas as pl
from jax.experimental.pallas import tpu as pltpu


def _round_up(x, m):
    return (x + m - 1) // m * m


def _pick_v_tile(v_pad, max_lanes=2048):
    """Largest multiple-of-128 divisor of v_pad that is <= max_lanes."""
    m = v_pad // 128
    for d in range(min(m, max_lanes // 128), 0, -1):
        if m % d == 0:
            return d * 128
    return 128


# --------------------------------------------------------------------------- #
# Decoder recurrence kernel (attention + LSTMCell); one batch tile per grid id.
# --------------------------------------------------------------------------- #
def make_decoder_kernel(*, num_pixels):
    P = num_pixels

    def decoder_kernel(
        enc_ref,      # (TB, P_pad, E_pad)          bf16
        emb_ref,      # (T*TB, M)                   bf16  (time-major within tile)
        w_init_ref,   # (E_pad, 2*Dp)               bf16  [init_h | init_c]
        b_init_ref,   # (1, 2*Dp)                   f32
        w_ea_ref,     # (E_pad, A_pad)              bf16  encoder_att
        b_ea_ref,     # (1, A_pad)                  f32
        w_fa_ref,     # (1, A_pad)                  f32   full_att weight (VPU)
        b_fa_ref,     # (1, 1)                      f32   full_att bias
        w_hf_ref,     # (Dp, A_pad+E_pad+4*Dp)      bf16  [decoder_att|f_beta|W_hh]
        b_hf_ref,     # (1,  A_pad+E_pad+4*Dp)      f32
        w_le_ref,     # (M, 4*Dp)                   bf16  W_ih rows for embedding
        b_le_ref,     # (1, 4*Dp)                   f32   b_ih (gate-padded)
        w_la_ref,     # (E_pad, 4*Dp)               bf16  W_ih rows for awe
        alpha_ref,    # out (T, TB, P_pad)          f32
        hall_ref,     # out (T, TB, Dp)             f32
        h_sc, c_sc,   # scratch (TB, Dp)            f32
        att1_sc,      # scratch (TB, P_pad, A_pad)  f32
        emb_sc,       # scratch (T*TB, 4*Dp)        f32
    ):
        f32, bf16 = jnp.float32, jnp.bfloat16
        TB, P_pad, E_pad = enc_ref.shape
        A_pad = w_ea_ref.shape[1]
        Dp = h_sc.shape[1]
        T = alpha_ref.shape[0]

        # ---- per-tile, time-invariant precompute (results parked in scratch) ----
        enc = enc_ref[...]                                              # bf16

        # init_hidden_state: mean over the ORIGINAL P pixels (padded rows are 0)
        mean_enc = jnp.sum(enc.astype(f32), axis=1) * f32(1.0 / P)      # (TB, E_pad)
        hc0 = (jnp.dot(mean_enc.astype(bf16), w_init_ref[...],
                       preferred_element_type=f32) + b_init_ref[...])   # (TB, 2*Dp)
        h_sc[...] = hc0[:, :Dp]
        c_sc[...] = hc0[:, Dp:]

        # encoder_att(encoder_out): time-invariant, computed once
        att1 = (jnp.dot(enc.reshape(TB * P_pad, E_pad), w_ea_ref[...],
                        preferred_element_type=f32) + b_ea_ref[...])
        att1_sc[...] = att1.reshape(TB, P_pad, A_pad)

        # embedding half of the LSTM input gates: all T steps in one MXU pass
        emb_sc[...] = (jnp.dot(emb_ref[...], w_le_ref[...],
                               preferred_element_type=f32) + b_le_ref[...])

        pix_ok = jax.lax.broadcasted_iota(jnp.int32, (TB, P_pad), 1) < P
        neg_big = f32(-1e30)

        def step(t, carry):
            h = h_sc[...]                                               # (TB, Dp) f32
            c = c_sc[...]

            # everything that consumes h in ONE weight stream:
            #   [decoder_att | f_beta | LSTM W_hh]
            hz = (jnp.dot(h.astype(bf16), w_hf_ref[...],
                          preferred_element_type=f32) + b_hf_ref[...])
            att2 = hz[:, :A_pad]
            gate = jax.nn.sigmoid(hz[:, A_pad:A_pad + E_pad])           # f_beta gate
            gates_hh = hz[:, A_pad + E_pad:]                            # (TB, 4*Dp)

            # --- Attention: softmax over pixels (f32), padded pixels masked out ---
            att = jnp.maximum(att1_sc[...] + att2[:, None, :], 0.0)     # ReLU
            e = jnp.sum(att * w_fa_ref[...], axis=-1) + b_fa_ref[...]   # (TB, P_pad)
            e = jnp.where(pix_ok, e, neg_big)
            e_max = jnp.max(e, axis=1, keepdims=True)
            p = jnp.exp(e - e_max)
            alpha = p * pl.reciprocal(jnp.sum(p, axis=1, keepdims=True),
                                      approx=True)                      # (TB, P_pad)

            # attention-weighted encoding on the MXU: (TB,1,P)x(TB,P,E) -> (TB,E)
            awe = jnp.einsum('bqp,bpe->bqe',
                             alpha[:, None, :].astype(bf16), enc_ref[...],
                             preferred_element_type=f32)[:, 0, :]
            awe = gate * awe

            # --- LSTMCell (gate blocks i,f,g,o each lane-aligned to Dp) ---
            row = pl.multiple_of(t * TB, TB)
            gates = (gates_hh + emb_sc[pl.ds(row, TB), :]
                     + jnp.dot(awe.astype(bf16), w_la_ref[...],
                               preferred_element_type=f32))             # (TB, 4*Dp)
            i_g = jax.nn.sigmoid(gates[:, 0 * Dp:1 * Dp])
            f_g = jax.nn.sigmoid(gates[:, 1 * Dp:2 * Dp])
            g_g = jnp.tanh(gates[:, 2 * Dp:3 * Dp])
            o_g = jax.nn.sigmoid(gates[:, 3 * Dp:4 * Dp])
            c_new = f_g * c + i_g * g_g
            h_new = o_g * jnp.tanh(c_new)

            alpha_ref[t] = alpha
            hall_ref[t] = h_new
            h_sc[...] = h_new
            c_sc[...] = c_new
            return carry

        jax.lax.fori_loop(0, T, step, 0)

    return decoder_kernel


# --------------------------------------------------------------------------- #
# fc vocabulary head: V-tiled matmul over the collected hidden states.
# --------------------------------------------------------------------------- #
def fc_kernel(h_ref, w_ref, b_ref, o_ref):
    o_ref[...] = (jnp.dot(h_ref[...], w_ref[...],
                          preferred_element_type=jnp.float32) + b_ref[...])


# --------------------------------------------------------------------------- #
# Wrapper
# --------------------------------------------------------------------------- #
def decoder_forward(encoder_out, encoded_captions, params, *, batch_tile=1):
    """encoder_out: (B, H, W, E) f32, encoded_captions: (B, L) i32."""
    f32, bf16 = jnp.float32, jnp.bfloat16
    B = encoder_out.shape[0]
    E = encoder_out.shape[-1]
    enc = encoder_out.reshape(B, -1, E).astype(f32)          # (B, P, E)
    P = enc.shape[1]
    T = encoded_captions.shape[1] - 1
    D = params['w_fc'].shape[0]
    V = params['w_fc'].shape[1]
    A = params['w_enc_att'].shape[1]
    M = params['embedding'].shape[1]

    TB = batch_tile
    assert B % TB == 0, "batch must be divisible by batch_tile"
    nB = B // TB

    P_pad = _round_up(P, 128)
    A_pad = _round_up(A, 128)
    E_pad = _round_up(E, 128)
    Dp = _round_up(D, 128)
    V_pad = _round_up(V, 128)

    def pad2(w, rows, cols):
        return jnp.pad(w, ((0, rows - w.shape[0]), (0, cols - w.shape[1])))

    def pad_gates(w):     # (in, 4*D) -> (in, 4*Dp): each i/f/g/o block lane-aligned
        return jnp.concatenate(
            [jnp.pad(w[:, k * D:(k + 1) * D], ((0, 0), (0, Dp - D))) for k in range(4)],
            axis=1)

    # --- activations (bf16 MXU operands; zero padding keeps the math exact) ---
    enc_p = jnp.pad(enc, ((0, 0), (0, P_pad - P), (0, E_pad - E))).astype(bf16)

    # embedding lookup (gather) is wrapper-side glue; rows laid out time-major
    # within each batch tile so the kernel reads a contiguous (TB, 4*Dp) slab/step.
    emb = jnp.take(params['embedding'], encoded_captions[:, :T], axis=0)   # (B,T,M)
    emb_r = (emb.reshape(nB, TB, T, M).transpose(0, 2, 1, 3)
             .reshape(nB, T * TB, M)).astype(bf16)

    # --- weights: fused / gate-padded / lane-aligned ---
    w_init = jnp.concatenate([pad2(params['w_init_h'], E_pad, Dp),
                              pad2(params['w_init_c'], E_pad, Dp)], axis=1).astype(bf16)
    b_init = jnp.concatenate([pad2(params['b_init_h'], 1, Dp),
                              pad2(params['b_init_c'], 1, Dp)], axis=1)

    w_ea = pad2(params['w_enc_att'], E_pad, A_pad).astype(bf16)
    b_ea = pad2(params['b_enc_att'], 1, A_pad)
    w_fa = pad2(params['w_full_att'], 1, A_pad)          # f32 (VPU path)
    b_fa = params['b_full_att']                          # (1, 1) f32

    w_hf = jnp.concatenate([pad2(params['w_dec_att'], Dp, A_pad),
                            pad2(params['w_f_beta'], Dp, E_pad),
                            pad2(pad_gates(params['w_lstm_hh']), Dp, 4 * Dp)],
                           axis=1).astype(bf16)
    b_hf = jnp.concatenate([pad2(params['b_dec_att'], 1, A_pad),
                            pad2(params['b_f_beta'], 1, E_pad),
                            pad_gates(params['b_lstm_hh'])], axis=1)

    w_le = pad_gates(params['w_lstm_ih'][:M]).astype(bf16)                    # (M, 4Dp)
    b_le = pad_gates(params['b_lstm_ih'])
    w_la = pad2(pad_gates(params['w_lstm_ih'][M:]), E_pad, 4 * Dp).astype(bf16)

    w_fc = pad2(params['w_fc'], Dp, V_pad).astype(bf16)
    b_fc = pad2(params['b_fc'], 1, V_pad)

    inputs = (enc_p, emb_r, w_init, b_init, w_ea, b_ea, w_fa, b_fa,
              w_hf, b_hf, w_le, b_le, w_la)

    def const_spec(x):
        nd = x.ndim
        return pl.BlockSpec(x.shape, lambda b, _n=nd: (0,) * _n)

    in_specs = [
        pl.BlockSpec((TB, P_pad, E_pad), lambda b: (b, 0, 0)),       # enc per tile
        pl.BlockSpec((None, T * TB, M), lambda b: (b, 0, 0)),        # emb per tile
    ] + [const_spec(x) for x in inputs[2:]]                          # weights resident

    out_specs = (
        pl.BlockSpec((None, T, TB, P_pad), lambda b: (b, 0, 0, 0)),  # alphas
        pl.BlockSpec((None, T, TB, Dp), lambda b: (b, 0, 0, 0)),     # hidden states
    )
    out_shape = (jax.ShapeDtypeStruct((nB, T, TB, P_pad), f32),
                 jax.ShapeDtypeStruct((nB, T, TB, Dp), f32))

    scratch_shapes = [
        pltpu.VMEM((TB, Dp), f32),                 # h
        pltpu.VMEM((TB, Dp), f32),                 # c
        pltpu.VMEM((TB, P_pad, A_pad), f32),       # att1 = encoder_att(enc)
        pltpu.VMEM((T * TB, 4 * Dp), f32),         # embedding gate pre-activations
    ]

    # scoped-VMEM limit sized to the actual footprint (v5e/v6e defaults are small)
    def nbytes(x):
        return int(np.prod(x.shape)) * jnp.dtype(x.dtype).itemsize
    est = sum(2 * nbytes(x) for x in inputs)
    est += 2 * (T * TB * P_pad + T * TB * Dp) * 4
    est += (2 * TB * Dp + TB * P_pad * A_pad + T * TB * 4 * Dp) * 4
    vmem_limit = int(min(max(est + (4 << 20), 16 << 20), 56 << 20))

    alphas_r, hall_r = pl.pallas_call(
        make_decoder_kernel(num_pixels=P),
        out_shape=out_shape,
        grid=(nB,),
        in_specs=in_specs,
        out_specs=out_specs,
        scratch_shapes=scratch_shapes,
        compiler_params=pltpu.CompilerParams(
            dimension_semantics=("parallel",),
            vmem_limit_bytes=vmem_limit),
    )(*inputs)

    # --- fc head: V-tiled matmul over all (T*B) hidden states, off the serial chain
    # TODO(synk): nn.Dropout(p) before fc is treated as identity (eval mode).
    R = nB * T * TB
    R_pad = _round_up(R, 8)
    h_flat = hall_r.reshape(R, Dp).astype(bf16)
    if R_pad != R:
        h_flat = jnp.pad(h_flat, ((0, R_pad - R), (0, 0)))

    tv = _pick_v_tile(V_pad)
    # TODO(synk): at very large T*B also tile the row axis of this matmul.
    preds_flat = pl.pallas_call(
        fc_kernel,
        out_shape=jax.ShapeDtypeStruct((R_pad, V_pad), f32),
        grid=(V_pad // tv,),
        in_specs=[pl.BlockSpec((R_pad, Dp), lambda j: (0, 0)),
                  pl.BlockSpec((Dp, tv), lambda j: (0, j)),
                  pl.BlockSpec((1, tv), lambda j: (0, j))],
        out_specs=pl.BlockSpec((R_pad, tv), lambda j: (0, j)),
        compiler_params=pltpu.CompilerParams(
            dimension_semantics=("parallel",)),
    )(h_flat, w_fc, b_fc)

    predictions = (preds_flat[:R].reshape(nB, T, TB, V_pad)
                   .transpose(0, 2, 1, 3).reshape(B, T, V_pad)[:, :, :V])
    alphas = alphas_r.transpose(0, 2, 1, 3).reshape(B, T, P_pad)[:, :, :P]
    return predictions, alphas


# --------------------------------------------------------------------------- #
# Pure-JAX reference mirroring the PyTorch forward (dropout = identity)
# --------------------------------------------------------------------------- #
def ref_forward(encoder_out, captions, params):
    B = encoder_out.shape[0]
    E = encoder_out.shape[-1]
    enc = encoder_out.reshape(B, -1, E)
    T = captions.shape[1] - 1
    emb = params['embedding'][captions[:, :T]]
    mean_enc = enc.mean(axis=1)
    h = mean_enc @ params['w_init_h'] + params['b_init_h']
    c = mean_enc @ params['w_init_c'] + params['b_init_c']
    D = h.shape[1]
    preds_all, alphas_all = [], []
    for t in range(T):
        att1 = jnp.einsum('bpe,ea->bpa', enc, params['w_enc_att']) + params['b_enc_att']
        att2 = h @ params['w_dec_att'] + params['b_dec_att']
        att = jax.nn.relu(att1 + att2[:, None, :])
        e = jnp.sum(att * params['w_full_att'][None, :, :], axis=-1) + params['b_full_att']
        alpha = jax.nn.softmax(e, axis=1)
        awe = jnp.sum(enc * alpha[:, :, None], axis=1)
        gate = jax.nn.sigmoid(h @ params['w_f_beta'] + params['b_f_beta'])
        awe = gate * awe
        x = jnp.concatenate([emb[:, t, :], awe], axis=1)
        gates = (x @ params['w_lstm_ih'] + params['b_lstm_ih']
                 + h @ params['w_lstm_hh'] + params['b_lstm_hh'])
        i_g = jax.nn.sigmoid(gates[:, :D])
        f_g = jax.nn.sigmoid(gates[:, D:2 * D])
        g_g = jnp.tanh(gates[:, 2 * D:3 * D])
        o_g = jax.nn.sigmoid(gates[:, 3 * D:4 * D])
        c = f_g * c + i_g * g_g
        h = o_g * jnp.tanh(c)
        preds_all.append(h @ params['w_fc'] + params['b_fc'])
        alphas_all.append(alpha)
    return jnp.stack(preds_all, axis=1), jnp.stack(alphas_all, axis=1)


def init_params(key, *, encoder_dim, attention_dim, embed_dim, decoder_dim, vocab_size):
    """Deterministic synthetic init mirroring the PyTorch module's parameter shapes."""
    def u(k, shape, bound):
        return jax.random.uniform(k, shape, jnp.float32, -bound, bound)

    ks = jax.random.split(key, 20)
    E, A, M, D, V = encoder_dim, attention_dim, embed_dim, decoder_dim, vocab_size
    inv = lambda n: 1.0 / np.sqrt(n)
    return {
        'embedding':  u(ks[0], (V, M), 0.1),
        'w_enc_att':  u(ks[1], (E, A), inv(E)),
        'b_enc_att':  u(ks[2], (1, A), inv(E)),
        'w_dec_att':  u(ks[3], (D, A), inv(D)),
        'b_dec_att':  u(ks[4], (1, A), inv(D)),
        'w_full_att': u(ks[5], (1, A), inv(A)),          # nn.Linear(A, 1), PyTorch layout
        'b_full_att': u(ks[6], (1, 1), inv(A)),
        'w_init_h':   u(ks[7], (E, D), inv(E)),
        'b_init_h':   u(ks[8], (1, D), inv(E)),
        'w_init_c':   u(ks[9], (E, D), inv(E)),
        'b_init_c':   u(ks[10], (1, D), inv(E)),
        'w_f_beta':   u(ks[11], (D, E), inv(D)),
        'b_f_beta':   u(ks[12], (1, E), inv(D)),
        'w_lstm_ih':  u(ks[13], (M + E, 4 * D), inv(D)),
        'b_lstm_ih':  u(ks[14], (1, 4 * D), inv(D)),
        'w_lstm_hh':  u(ks[15], (D, 4 * D), inv(D)),
        'b_lstm_hh':  u(ks[16], (1, 4 * D), inv(D)),
        'w_fc':       u(ks[17], (D, V), 0.1),
        'b_fc':       jnp.zeros((1, V), jnp.float32),
    }


if __name__ == "__main__":
    # small shapes consistent with the module
    B = 2                    # batch
    enc_size = 4             # enc_image_size -> num_pixels P = 16
    encoder_dim = 32
    attention_dim = 32
    embed_dim = 32
    decoder_dim = 32
    vocab_size = 40
    cap_len = 9              # decode_length = 8

    key = jax.random.PRNGKey(0)
    k_enc, k_cap, k_par = jax.random.split(key, 3)
    encoder_out = jax.random.normal(k_enc, (B, enc_size, enc_size, encoder_dim), jnp.float32)
    encoded_captions = jax.random.randint(k_cap, (B, cap_len), 0, vocab_size, jnp.int32)
    params = init_params(k_par, encoder_dim=encoder_dim, attention_dim=attention_dim,
                         embed_dim=embed_dim, decoder_dim=decoder_dim, vocab_size=vocab_size)

    predictions, alphas = decoder_forward(encoder_out, encoded_captions, params, batch_tile=1)
    jax.block_until_ready((predictions, alphas))

    # sanity check against the pure-JAX (f32) reference
    ref_preds, ref_alphas = ref_forward(encoder_out, encoded_captions, params)
    assert predictions.shape == (B, cap_len - 1, vocab_size)
    assert alphas.shape == (B, cap_len - 1, enc_size * enc_size)
    assert np.all(np.isfinite(np.asarray(predictions)))
    assert np.allclose(np.asarray(predictions), np.asarray(ref_preds), atol=5e-2, rtol=5e-2)
    assert np.allclose(np.asarray(alphas), np.asarray(ref_alphas), atol=5e-2, rtol=5e-2)

    print("KERNEL_OK")
</pallas_src>

<mosaic_0001>
module attributes {stable_mosaic.version = 11 : i64} {
  func.func @decoder_kernel(%arg0: i32, %arg1: memref<1x128x128xbf16, #tpu.memory_space<vmem>>, %arg2: memref<1x8x32xbf16, #tpu.memory_space<vmem>>, %arg3: memref<128x256xbf16, #tpu.memory_space<vmem>>, %arg4: memref<1x256xf32, #tpu.memory_space<vmem>>, %arg5: memref<128x128xbf16, #tpu.memory_space<vmem>>, %arg6: memref<1x128xf32, #tpu.memory_space<vmem>>, %arg7: memref<1x128xf32, #tpu.memory_space<vmem>>, %arg8: memref<1x1xf32, #tpu.memory_space<vmem>>, %arg9: memref<128x768xbf16, #tpu.memory_space<vmem>>, %arg10: memref<1x768xf32, #tpu.memory_space<vmem>>, %arg11: memref<32x512xbf16, #tpu.memory_space<vmem>>, %arg12: memref<1x512xf32, #tpu.memory_space<vmem>>, %arg13: memref<128x512xbf16, #tpu.memory_space<vmem>>, %arg14: memref<1x8x1x128xf32, #tpu.memory_space<vmem>>, %arg15: memref<1x8x1x128xf32, #tpu.memory_space<vmem>>, %arg16: memref<1x128xf32, #tpu.memory_space<vmem>>, %arg17: memref<1x128xf32, #tpu.memory_space<vmem>>, %arg18: memref<1x128x128xf32, #tpu.memory_space<vmem>>, %arg19: memref<8x512xf32, #tpu.memory_space<vmem>>) attributes {dimension_semantics = [#tpu.dimension_semantics<parallel>], iteration_bounds = array<i64: 2>, scalar_prefetch = 0 : i64, scratch_operands = 4 : i64, tpu.core_type = #tpu.core_type<tc>, window_params = [{transform_indices = @transform_0, window_bounds = array<i64: 1, 128, 128>}, {transform_indices = @transform_1, window_bounds = array<i64: 1, 8, 32>}, {pipeline_mode = #tpu.pipeline_mode<synchronous>, transform_indices = @transform_2, window_bounds = array<i64: 128, 256>}, {pipeline_mode = #tpu.pipeline_mode<synchronous>, transform_indices = @transform_3, window_bounds = array<i64: 1, 256>}, {pipeline_mode = #tpu.pipeline_mode<synchronous>, transform_indices = @transform_4, window_bounds = array<i64: 128, 128>}, {pipeline_mode = #tpu.pipeline_mode<synchronous>, transform_indices = @transform_5, window_bounds = array<i64: 1, 128>}, {pipeline_mode = #tpu.pipeline_mode<synchronous>, transform_indices = @transform_6, window_bounds = array<i64: 1, 128>}, {pipeline_mode = #tpu.pipeline_mode<synchronous>, transform_indices = @transform_7, window_bounds = array<i64: 1, 1>}, {pipeline_mode = #tpu.pipeline_mode<synchronous>, transform_indices = @transform_8, window_bounds = array<i64: 128, 768>}, {pipeline_mode = #tpu.pipeline_mode<synchronous>, transform_indices = @transform_9, window_bounds = array<i64: 1, 768>}, {pipeline_mode = #tpu.pipeline_mode<synchronous>, transform_indices = @transform_10, window_bounds = array<i64: 32, 512>}, {pipeline_mode = #tpu.pipeline_mode<synchronous>, transform_indices = @transform_11, window_bounds = array<i64: 1, 512>}, {pipeline_mode = #tpu.pipeline_mode<synchronous>, transform_indices = @transform_12, window_bounds = array<i64: 128, 512>}, {transform_indices = @transform_13, window_bounds = array<i64: 1, 8, 1, 128>}, {transform_indices = @transform_14, window_bounds = array<i64: 1, 8, 1, 128>}]} {
    %c0 = arith.constant 0 : index
    %c0_0 = arith.constant 0 : index
    %c0_1 = arith.constant 0 : index
    %0 = vector.load %arg1[%c0, %c0_0, %c0_1] : memref<1x128x128xbf16, #tpu.memory_space<vmem>>, vector<1x128x128xbf16>
    %1 = arith.extf %0 : vector<1x128x128xbf16> to vector<1x128x128xf32>
    %cst = arith.constant dense<0.000000e+00> : vector<1x128xf32>
    %2 = vector.multi_reduction <add>, %1, %cst [1] : vector<1x128x128xf32> to vector<1x128xf32>
    %cst_2 = arith.constant 6.250000e-02 : f32
    %3 = vector.broadcast %cst_2 : f32 to vector<1x128xf32>
    %4 = arith.mulf %2, %3 : vector<1x128xf32>
    %5 = arith.truncf %4 : vector<1x128xf32> to vector<1x128xbf16>
    %c0_3 = arith.constant 0 : index
    %c0_4 = arith.constant 0 : index
    %6 = vector.load %arg3[%c0_3, %c0_4] : memref<128x256xbf16, #tpu.memory_space<vmem>>, vector<128x256xbf16>
    %cst_5 = arith.constant dense<0.000000e+00> : vector<1x256xf32>
    %7 = tpu.matmul %5, %6, %cst_5 {dimension_numbers = #tpu.dot_dimension_numbers<[1], [0], [0], [1], [0, 0, 1, 1], [], []>} : vector<1x128xbf16>, vector<128x256xbf16>, vector<1x256xf32> -> vector<1x256xf32>
    %c0_6 = arith.constant 0 : index
    %c0_7 = arith.constant 0 : index
    %8 = vector.load %arg4[%c0_6, %c0_7] : memref<1x256xf32, #tpu.memory_space<vmem>>, vector<1x256xf32>
    %9 = arith.addf %7, %8 : vector<1x256xf32>
    %10 = vector.extract_strided_slice %9 {offsets = [0, 0], sizes = [1, 128], strides = [1, 1]} : vector<1x256xf32> to vector<1x128xf32>
    %c0_8 = arith.constant 0 : index
    %c0_9 = arith.constant 0 : index
    %11 = vector.load %arg16[%c0_8, %c0_9] : memref<1x128xf32, #tpu.memory_space<vmem>>, vector<1x128xf32>
    tpu.vector_store %arg16[%c0_8, %c0_9], %10 {strides = array<i32>} : memref<1x128xf32, #tpu.memory_space<vmem>>, vector<1x128xf32>,
    %12 = vector.extract_strided_slice %9 {offsets = [0, 128], sizes = [1, 128], strides = [1, 1]} : vector<1x256xf32> to vector<1x128xf32>
    %c0_10 = arith.constant 0 : index
    %c0_11 = arith.constant 0 : index
    %13 = vector.load %arg17[%c0_10, %c0_11] : memref<1x128xf32, #tpu.memory_space<vmem>>, vector<1x128xf32>
    tpu.vector_store %arg17[%c0_10, %c0_11], %12 {strides = array<i32>} : memref<1x128xf32, #tpu.memory_space<vmem>>, vector<1x128xf32>,
    %14 = vector.shape_cast %0 : vector<1x128x128xbf16> to vector<128x128xbf16>
    %c0_12 = arith.constant 0 : index
    %c0_13 = arith.constant 0 : index
    %15 = vector.load %arg5[%c0_12, %c0_13] : memref<128x128xbf16, #tpu.memory_space<vmem>>, vector<128x128xbf16>
    %cst_14 = arith.constant dense<0.000000e+00> : vector<128x128xf32>
    %16 = tpu.matmul %14, %15, %cst_14 {dimension_numbers = #tpu.dot_dimension_numbers<[1], [0], [0], [1], [0, 0, 1, 1], [], []>} : vector<128x128xbf16>, vector<128x128xbf16>, vector<128x128xf32> -> vector<128x128xf32>
    %c0_15 = arith.constant 0 : index
    %c0_16 = arith.constant 0 : index
    %17 = vector.load %arg6[%c0_15, %c0_16] : memref<1x128xf32, #tpu.memory_space<vmem>>, vector<1x128xf32>
    %18 = vector.broadcast %17 : vector<1x128xf32> to vector<128x128xf32>
    %19 = arith.addf %16, %18 : vector<128x128xf32>
    %20 = vector.shape_cast %19 : vector<128x128xf32> to vector<1x128x128xf32>
    %c0_17 = arith.constant 0 : index
    %c0_18 = arith.constant 0 : index
    %c0_19 = arith.constant 0 : index
    %21 = vector.load %arg18[%c0_17, %c0_18, %c0_19] : memref<1x128x128xf32, #tpu.memory_space<vmem>>, vector<1x128x128xf32>
    tpu.vector_store %arg18[%c0_17, %c0_18, %c0_19], %20 {strides = array<i32>} : memref<1x128x128xf32, #tpu.memory_space<vmem>>, vector<1x128x128xf32>,
    %c0_20 = arith.constant 0 : index
    %c0_21 = arith.constant 0 : index
    %c0_22 = arith.constant 0 : index
    %22 = vector.load %arg2[%c0_20, %c0_21, %c0_22] : memref<1x8x32xbf16, #tpu.memory_space<vmem>>, vector<1x8x32xbf16>
    %23 = vector.shape_cast %22 : vector<1x8x32xbf16> to vector<8x32xbf16>
    %c0_23 = arith.constant 0 : index
    %c0_24 = arith.constant 0 : index
    %24 = vector.load %arg11[%c0_23, %c0_24] : memref<32x512xbf16, #tpu.memory_space<vmem>>, vector<32x512xbf16>
    %cst_25 = arith.constant dense<0.000000e+00> : vector<8x512xf32>
    %25 = tpu.matmul %23, %24, %cst_25 {dimension_numbers = #tpu.dot_dimension_numbers<[1], [0], [0], [1], [0, 0, 1, 1], [], []>} : vector<8x32xbf16>, vector<32x512xbf16>, vector<8x512xf32> -> vector<8x512xf32>
    %c0_26 = arith.constant 0 : index
    %c0_27 = arith.constant 0 : index
    %26 = vector.load %arg12[%c0_26, %c0_27] : memref<1x512xf32, #tpu.memory_space<vmem>>, vector<1x512xf32>
    %27 = vector.broadcast %26 : vector<1x512xf32> to vector<8x512xf32>
    %28 = arith.addf %25, %27 : vector<8x512xf32>
    %c0_28 = arith.constant 0 : index
    %c0_29 = arith.constant 0 : index
    %29 = vector.load %arg19[%c0_28, %c0_29] : memref<8x512xf32, #tpu.memory_space<vmem>>, vector<8x512xf32>
    tpu.vector_store %arg19[%c0_28, %c0_29], %28 {strides = array<i32>} : memref<8x512xf32, #tpu.memory_space<vmem>>, vector<8x512xf32>,
    %30 = tpu.iota {dimensions = array<i32: 1>} : vector<1x128xi32>
    %c16_i32 = arith.constant 16 : i32
    %31 = vector.broadcast %c16_i32 : i32 to vector<1x128xi32>
    %32 = arith.cmpi slt, %30, %31 : vector<1x128xi32>
    %cst_30 = arith.constant -1.000000e+30 : f32
    %c0_i32 = arith.constant 0 : i32
    %c8_i32 = arith.constant 8 : i32
    %33 = arith.addi %c0_i32, %c8_i32 : i32
    %c1_i32 = arith.constant 1 : i32
    scf.for %arg20 = %c0_i32 to %33 step %c1_i32  : i32 {
      %c0_32 = arith.constant 0 : index
      %c0_33 = arith.constant 0 : index
      %34 = vector.load %arg16[%c0_32, %c0_33] : memref<1x128xf32, #tpu.memory_space<vmem>>, vector<1x128xf32>
      %c0_34 = arith.constant 0 : index
      %c0_35 = arith.constant 0 : index
      %35 = vector.load %arg17[%c0_34, %c0_35] : memref<1x128xf32, #tpu.memory_space<vmem>>, vector<1x128xf32>
      %36 = arith.truncf %34 : vector<1x128xf32> to vector<1x128xbf16>
      %c0_36 = arith.constant 0 : index
      %c0_37 = arith.constant 0 : index
      %37 = vector.load %arg9[%c0_36, %c0_37] : memref<128x768xbf16, #tpu.memory_space<vmem>>, vector<128x768xbf16>
      %cst_38 = arith.constant dense<0.000000e+00> : vector<1x768xf32>
      %38 = tpu.matmul %36, %37, %cst_38 {dimension_numbers = #tpu.dot_dimension_numbers<[1], [0], [0], [1], [0, 0, 1, 1], [], []>} : vector<1x128xbf16>, vector<128x768xbf16>, vector<1x768xf32> -> vector<1x768xf32>
      %c0_39 = arith.constant 0 : index
      %c0_40 = arith.constant 0 : index
      %39 = vector.load %arg10[%c0_39, %c0_40] : memref<1x768xf32, #tpu.memory_space<vmem>>, vector<1x768xf32>
      %40 = arith.addf %38, %39 : vector<1x768xf32>
      %41 = vector.extract_strided_slice %40 {offsets = [0, 0], sizes = [1, 128], strides = [1, 1]} : vector<1x768xf32> to vector<1x128xf32>
      %42 = vector.extract_strided_slice %40 {offsets = [0, 128], sizes = [1, 128], strides = [1, 1]} : vector<1x768xf32> to vector<1x128xf32>
      %43 = arith.negf %42 : vector<1x128xf32>
      %44 = math.exp %43 : vector<1x128xf32>
      %cst_41 = arith.constant 1.000000e+00 : f32
      %45 = vector.broadcast %cst_41 : f32 to vector<1x128xf32>
      %46 = arith.addf %45, %44 : vector<1x128xf32>
      %47 = arith.divf %45, %46 : vector<1x128xf32>
      %48 = vector.extract_strided_slice %40 {offsets = [0, 256], sizes = [1, 512], strides = [1, 1]} : vector<1x768xf32> to vector<1x512xf32>
      %c0_42 = arith.constant 0 : index
      %c0_43 = arith.constant 0 : index
      %c0_44 = arith.constant 0 : index
      %49 = vector.load %arg18[%c0_42, %c0_43, %c0_44] : memref<1x128x128xf32, #tpu.memory_space<vmem>>, vector<1x128x128xf32>
      %50 = vector.shape_cast %41 : vector<1x128xf32> to vector<1x1x128xf32>
      %51 = vector.broadcast %50 : vector<1x1x128xf32> to vector<1x128x128xf32>
      %52 = arith.addf %49, %51 : vector<1x128x128xf32>
      %cst_45 = arith.constant 0.000000e+00 : f32
      %53 = vector.broadcast %cst_45 : f32 to vector<1x128x128xf32>
      %54 = arith.maximumf %52, %53 : vector<1x128x128xf32>
      %c0_46 = arith.constant 0 : index
      %c0_47 = arith.constant 0 : index
      %55 = vector.load %arg7[%c0_46, %c0_47] : memref<1x128xf32, #tpu.memory_space<vmem>>, vector<1x128xf32>
      %56 = vector.shape_cast %55 : vector<1x128xf32> to vector<1x1x128xf32>
      %57 = vector.broadcast %56 : vector<1x1x128xf32> to vector<1x128x128xf32>
      %58 = arith.mulf %54, %57 : vector<1x128x128xf32>
      %cst_48 = arith.constant dense<0.000000e+00> : vector<1x128xf32>
      %59 = vector.multi_reduction <add>, %58, %cst_48 [2] : vector<1x128x128xf32> to vector<1x128xf32>
      %c0_49 = arith.constant 0 : index
      %c0_50 = arith.constant 0 : index
      %60 = vector.load %arg8[%c0_49, %c0_50] : memref<1x1xf32, #tpu.memory_space<vmem>>, vector<1x1xf32>
      %61 = vector.broadcast %60 : vector<1x1xf32> to vector<1x128xf32>
      %62 = arith.addf %59, %61 : vector<1x128xf32>
      %63 = vector.broadcast %cst_30 : f32 to vector<1x128xf32>
      %64 = arith.select %32, %62, %63 : vector<1x128xi1>, vector<1x128xf32>
      %cst_51 = arith.constant dense<0xFF800000> : vector<1xf32>
      %65 = vector.multi_reduction <maximumf>, %64, %cst_51 [1] : vector<1x128xf32> to vector<1xf32>
      %66 = vector.shape_cast %65 : vector<1xf32> to vector<1x1xf32>
      %67 = vector.broadcast %66 : vector<1x1xf32> to vector<1x128xf32>
      %68 = arith.subf %64, %67 : vector<1x128xf32>
      %69 = math.exp %68 : vector<1x128xf32>
      %cst_52 = arith.constant dense<0.000000e+00> : vector<1xf32>
      %70 = vector.multi_reduction <add>, %69, %cst_52 [1] : vector<1x128xf32> to vector<1xf32>
      %71 = vector.shape_cast %70 : vector<1xf32> to vector<1x1xf32>
      %72 = tpu.reciprocal %71 {approx = true} : vector<1x1xf32> -> vector<1x1xf32>
      %73 = vector.broadcast %72 : vector<1x1xf32> to vector<1x128xf32>
      %74 = arith.mulf %69, %73 : vector<1x128xf32>
      %75 = vector.shape_cast %74 : vector<1x128xf32> to vector<1x1x128xf32>
      %76 = arith.truncf %75 : vector<1x1x128xf32> to vector<1x1x128xbf16>
      %c0_53 = arith.constant 0 : index
      %c0_54 = arith.constant 0 : index
      %c0_55 = arith.constant 0 : index
      %77 = vector.load %arg1[%c0_53, %c0_54, %c0_55] : memref<1x128x128xbf16, #tpu.memory_space<vmem>>, vector<1x128x128xbf16>
      "tpu.trace_start"() <{level = 10 : i32, message = "bqp,bpe->bqe"}> : () -> ()
      %cst_56 = arith.constant dense<0.000000e+00> : vector<1x1x128xf32>
      %78 = tpu.matmul %76, %77, %cst_56 {dimension_numbers = #tpu.dot_dimension_numbers<[2], [1], [1], [2], [0, 0, 0, 1, 1, 2], [0], [0]>} : vector<1x1x128xbf16>, vector<1x128x128xbf16>, vector<1x1x128xf32> -> vector<1x1x128xf32>
      "tpu.trace_stop"() : () -> ()
      %79 = vector.shape_cast %78 : vector<1x1x128xf32> to vector<1x128xf32>
      %80 = arith.mulf %47, %79 : vector<1x128xf32>
      %c1_i32_57 = arith.constant 1 : i32
      %81 = arith.muli %arg20, %c1_i32_57 : i32
      %82 = tpu.assume_multiple %81, 1 : i32
      %83 = arith.index_cast %82 : i32 to index
      %c0_58 = arith.constant 0 : index
      %84 = vector.load %arg19[%83, %c0_58] : memref<8x512xf32, #tpu.memory_space<vmem>>, vector<1x512xf32>
      %85 = arith.addf %48, %84 : vector<1x512xf32>
      %86 = arith.truncf %80 : vector<1x128xf32> to vector<1x128xbf16>
      %c0_59 = arith.constant 0 : index
      %c0_60 = arith.constant 0 : index
      %87 = vector.load %arg13[%c0_59, %c0_60] : memref<128x512xbf16, #tpu.memory_space<vmem>>, vector<128x512xbf16>
      %cst_61 = arith.constant dense<0.000000e+00> : vector<1x512xf32>
      %88 = tpu.matmul %86, %87, %cst_61 {dimension_numbers = #tpu.dot_dimension_numbers<[1], [0], [0], [1], [0, 0, 1, 1], [], []>} : vector<1x128xbf16>, vector<128x512xbf16>, vector<1x512xf32> -> vector<1x512xf32>
      %89 = arith.addf %85, %88 : vector<1x512xf32>
      %90 = vector.extract_strided_slice %89 {offsets = [0, 0], sizes = [1, 128], strides = [1, 1]} : vector<1x512xf32> to vector<1x128xf32>
      %91 = arith.negf %90 : vector<1x128xf32>
      %92 = math.exp %91 : vector<1x128xf32>
      %cst_62 = arith.constant 1.000000e+00 : f32
      %93 = vector.broadcast %cst_62 : f32 to vector<1x128xf32>
      %94 = arith.addf %93, %92 : vector<1x128xf32>
      %95 = arith.divf %93, %94 : vector<1x128xf32>
      %96 = vector.extract_strided_slice %89 {offsets = [0, 128], sizes = [1, 128], strides = [1, 1]} : vector<1x512xf32> to vector<1x128xf32>
      %97 = arith.negf %96 : vector<1x128xf32>
      %98 = math.exp %97 : vector<1x128xf32>
      %cst_63 = arith.constant 1.000000e+00 : f32
      %99 = vector.broadcast %cst_63 : f32 to vector<1x128xf32>
      %100 = arith.addf %99, %98 : vector<1x128xf32>
      %101 = arith.divf %99, %100 : vector<1x128xf32>
      %102 = vector.extract_strided_slice %89 {offsets = [0, 256], sizes = [1, 128], strides = [1, 1]} : vector<1x512xf32> to vector<1x128xf32>
      %103 = math.tanh %102 : vector<1x128xf32>
      %104 = vector.extract_strided_slice %89 {offsets = [0, 384], sizes = [1, 128], strides = [1, 1]} : vector<1x512xf32> to vector<1x128xf32>
      %105 = arith.negf %104 : vector<1x128xf32>
      %106 = math.exp %105 : vector<1x128xf32>
      %cst_64 = arith.constant 1.000000e+00 : f32
      %107 = vector.broadcast %cst_64 : f32 to vector<1x128xf32>
      %108 = arith.addf %107, %106 : vector<1x128xf32>
      %109 = arith.divf %107, %108 : vector<1x128xf32>
      %110 = arith.mulf %101, %35 : vector<1x128xf32>
      %111 = arith.mulf %95, %103 : vector<1x128xf32>
      %112 = arith.addf %110, %111 : vector<1x128xf32>
      %113 = math.tanh %112 : vector<1x128xf32>
      %114 = arith.mulf %109, %113 : vector<1x128xf32>
      %c0_65 = arith.constant 0 : index
      %115 = arith.index_cast %arg20 : i32 to index
      %c0_66 = arith.constant 0 : index
      %c0_67 = arith.constant 0 : index
      %116 = vector.load %arg14[%c0_65, %115, %c0_66, %c0_67] : memref<1x8x1x128xf32, #tpu.memory_space<vmem>>, vector<1x1x1x128xf32>
      %117 = vector.shape_cast %116 : vector<1x1x1x128xf32> to vector<1x128xf32>
      %118 = vector.shape_cast %74 : vector<1x128xf32> to vector<1x1x1x128xf32>
      tpu.vector_store %arg14[%c0_65, %115, %c0_66, %c0_67], %118 {strides = array<i32>} : memref<1x8x1x128xf32, #tpu.memory_space<vmem>>, vector<1x1x1x128xf32>,
      %c0_68 = arith.constant 0 : index
      %119 = arith.index_cast %arg20 : i32 to index
      %c0_69 = arith.constant 0 : index
      %c0_70 = arith.constant 0 : index
      %120 = vector.load %arg15[%c0_68, %119, %c0_69, %c0_70] : memref<1x8x1x128xf32, #tpu.memory_space<vmem>>, vector<1x1x1x128xf32>
      %121 = vector.shape_cast %120 : vector<1x1x1x128xf32> to vector<1x128xf32>
      %122 = vector.shape_cast %114 : vector<1x128xf32> to vector<1x1x1x128xf32>
      tpu.vector_store %arg15[%c0_68, %119, %c0_69, %c0_70], %122 {strides = array<i32>} : memref<1x8x1x128xf32, #tpu.memory_space<vmem>>, vector<1x1x1x128xf32>,
      %c0_71 = arith.constant 0 : index
      %c0_72 = arith.constant 0 : index
      %123 = vector.load %arg16[%c0_71, %c0_72] : memref<1x128xf32, #tpu.memory_space<vmem>>, vector<1x128xf32>
      tpu.vector_store %arg16[%c0_71, %c0_72], %114 {strides = array<i32>} : memref<1x128xf32, #tpu.memory_space<vmem>>, vector<1x128xf32>,
      %c0_73 = arith.constant 0 : index
      %c0_74 = arith.constant 0 : index
      %124 = vector.load %arg17[%c0_73, %c0_74] : memref<1x128xf32, #tpu.memory_space<vmem>>, vector<1x128xf32>
      tpu.vector_store %arg17[%c0_73, %c0_74], %112 {strides = array<i32>} : memref<1x128xf32, #tpu.memory_space<vmem>>, vector<1x128xf32>,
    }
    %c8_i32_31 = arith.constant 8 : i32
    return
  }
  func.func @transform_0(%arg0: i32) -> (i32, i32, i32) {
    %c0_i32 = arith.constant 0 : i32
    %c0_i32_0 = arith.constant 0 : i32
    %c0_i32_1 = arith.constant 0 : i32
    return %arg0, %c0_i32, %c0_i32_0 : i32, i32, i32
  }
  func.func @transform_1(%arg0: i32) -> (i32, i32, i32) {
    %c0_i32 = arith.constant 0 : i32
    %c0_i32_0 = arith.constant 0 : i32
    %c0_i32_1 = arith.constant 0 : i32
    return %arg0, %c0_i32, %c0_i32_0 : i32, i32, i32
  }
  func.func @transform_2(%arg0: i32) -> (i32, i32) {
    %c0_i32 = arith.constant 0 : i32
    %c0_i32_0 = arith.constant 0 : i32
    %c0_i32_1 = arith.constant 0 : i32
    return %c0_i32, %c0_i32_0 : i32, i32
  }
  func.func @transform_3(%arg0: i32) -> (i32, i32) {
    %c0_i32 = arith.constant 0 : i32
    %c0_i32_0 = arith.constant 0 : i32
    %c0_i32_1 = arith.constant 0 : i32
    return %c0_i32, %c0_i32_0 : i32, i32
  }
  func.func @transform_4(%arg0: i32) -> (i32, i32) {
    %c0_i32 = arith.constant 0 : i32
    %c0_i32_0 = arith.constant 0 : i32
    %c0_i32_1 = arith.constant 0 : i32
    return %c0_i32, %c0_i32_0 : i32, i32
  }
  func.func @transform_5(%arg0: i32) -> (i32, i32) {
    %c0_i32 = arith.constant 0 : i32
    %c0_i32_0 = arith.constant 0 : i32
    %c0_i32_1 = arith.constant 0 : i32
    return %c0_i32, %c0_i32_0 : i32, i32
  }
  func.func @transform_6(%arg0: i32) -> (i32, i32) {
    %c0_i32 = arith.constant 0 : i32
    %c0_i32_0 = arith.constant 0 : i32
    %c0_i32_1 = arith.constant 0 : i32
    return %c0_i32, %c0_i32_0 : i32, i32
  }
  func.func @transform_7(%arg0: i32) -> (i32, i32) {
    %c0_i32 = arith.constant 0 : i32
    %c0_i32_0 = arith.constant 0 : i32
    %c0_i32_1 = arith.constant 0 : i32
    return %c0_i32, %c0_i32_0 : i32, i32
  }
  func.func @transform_8(%arg0: i32) -> (i32, i32) {
    %c0_i32 = arith.constant 0 : i32
    %c0_i32_0 = arith.constant 0 : i32
    %c0_i32_1 = arith.constant 0 : i32
    return %c0_i32, %c0_i32_0 : i32, i32
  }
  func.func @transform_9(%arg0: i32) -> (i32, i32) {
    %c0_i32 = arith.constant 0 : i32
    %c0_i32_0 = arith.constant 0 : i32
    %c0_i32_1 = arith.constant 0 : i32
    return %c0_i32, %c0_i32_0 : i32, i32
  }
  func.func @transform_10(%arg0: i32) -> (i32, i32) {
    %c0_i32 = arith.constant 0 : i32
    %c0_i32_0 = arith.constant 0 : i32
    %c0_i32_1 = arith.constant 0 : i32
    return %c0_i32, %c0_i32_0 : i32, i32
  }
  func.func @transform_11(%arg0: i32) -> (i32, i32) {
    %c0_i32 = arith.constant 0 : i32
    %c0_i32_0 = arith.constant 0 : i32
    %c0_i32_1 = arith.constant 0 : i32
    return %c0_i32, %c0_i32_0 : i32, i32
  }
  func.func @transform_12(%arg0: i32) -> (i32, i32) {
    %c0_i32 = arith.constant 0 : i32
    %c0_i32_0 = arith.constant 0 : i32
    %c0_i32_1 = arith.constant 0 : i32
    return %c0_i32, %c0_i32_0 : i32, i32
  }
  func.func @transform_13(%arg0: i32) -> (i32, i32, i32, i32) {
    %c0_i32 = arith.constant 0 : i32
    %c0_i32_0 = arith.constant 0 : i32
    %c0_i32_1 = arith.constant 0 : i32
    %c0_i32_2 = arith.constant 0 : i32
    return %arg0, %c0_i32, %c0_i32_0, %c0_i32_1 : i32, i32, i32, i32
  }
  func.func @transform_14(%arg0: i32) -> (i32, i32, i32, i32) {
    %c0_i32 = arith.constant 0 : i32
    %c0_i32_0 = arith.constant 0 : i32
    %c0_i32_1 = arith.constant 0 : i32
    %c0_i32_2 = arith.constant 0 : i32
    return %arg0, %c0_i32, %c0_i32_0, %c0_i32_1 : i32, i32, i32, i32
  }
}

</mosaic_0001>

<llo_original>
// kernel: tpu_custom_call.1
$region0: #{tpu_custom_call.1}
  #allocation0 [shape = 'u32[]', space=smem, size = 0x4, offset = 0x4, fixed_abs, tag = 'smem constant byte address 0x4 - core index']
  #allocation1 [shape = 'u32[144,128]{1,0:T(1,128)}', space=vmem, size = 0x12000, scoped, tag = 'internal scratch']
  #allocation2 [shape = 'f32[1,128]{1,0:T(1,128)}', space=vmem, size = 0x200, scoped, tag = 'scratch operand']
  #allocation3 [shape = 'f32[1,128]{1,0:T(1,128)}', space=vmem, size = 0x200, scoped, tag = 'scratch operand']
  #allocation4 [shape = 'f32[1,128,128]{2,1,0:T(8,128)}', space=vmem, size = 0x10000, scoped, tag = 'scratch operand']
  #allocation5 [shape = 'f32[8,512]{1,0:T(8,128)}', space=vmem, size = 0x4000, scoped, tag = 'scratch operand']
  #allocation6 [shape = 'f32[1,1]{1,0:T(1,128)S(1)}', space=vmem, size = 0x200, scoped, tag = 'scoped memory for tpu_custom_call.1']
  %s0 = inlined_call_operand.hbm [shape: bf16[2,128,128], index: 0, kind: input, shape index: {}]
  %s1 = inlined_call_operand.hbm [shape: bf16[2,8,32], index: 1, kind: input, shape index: {}]
  %s2 = inlined_call_operand.hbm [shape: bf16[128,256], index: 2, kind: input, shape index: {}]
  %s3 = inlined_call_operand.vmem [shape: f32[1,256], index: 3, kind: input, shape index: {}]
  %s4 = inlined_call_operand.hbm [shape: bf16[128,128], index: 4, kind: input, shape index: {}]
  %s5 = inlined_call_operand.vmem [shape: f32[1,128], index: 5, kind: input, shape index: {}]
  %s6 = inlined_call_operand.vmem [shape: f32[1,128], index: 6, kind: input, shape index: {}]
  %s7 = inlined_call_operand.<no memory space> [shape: f32[1,1], index: 7, kind: input, shape index: {}]
  %s8 = inlined_call_operand.hbm [shape: bf16[128,768], index: 8, kind: input, shape index: {}]
  %s9 = inlined_call_operand.vmem [shape: f32[1,768], index: 9, kind: input, shape index: {}]
  %s10 = inlined_call_operand.hbm [shape: bf16[32,512], index: 10, kind: input, shape index: {}]
  %s11 = inlined_call_operand.vmem [shape: f32[1,512], index: 11, kind: input, shape index: {}]
  %s12 = inlined_call_operand.hbm [shape: bf16[128,512], index: 12, kind: input, shape index: {}]
  %s13 = inlined_call_operand.hbm [shape: f32[2,8,1,128], index: 13, kind: output, shape index: {0}]
  %s14 = inlined_call_operand.hbm [shape: f32[2,8,1,128], index: 14, kind: output, shape index: {1}]
  %15 = xla_tuple %s13, %s14
  %s16 = sld [smem:[#allocation0]]
  $region128: #{tpu_custom_call.1} parent=0
    _
  %s18 = ssub.s32 1, %s16
  %s19 = scalar_select 0, %s18, %s16
  %v20 = vstv %s7
  %21 = vst [vmem:[#allocation6] sm:$0x1] %v20
  $region1: #{tpu_custom_call.1} parent=0
    #allocation7 [shape = 'u8[65536]{0}', space=vmem, size = 0x10000, scoped, tag = 'input window, operand 0']
    #allocation8 [shape = 's32[2]{0}', space=sflag, size = 0x8, scoped, tag = 'scoped memory for tpu_custom_call.1']
    #allocation9 [shape = 's32[2]{0}', space=sflag, size = 0x8, scoped, tag = 'scoped memory for tpu_custom_call.1']
    #allocation10 [shape = 'u8[4096]{0}', space=vmem, size = 0x1000, scoped, tag = 'input window, operand 1']
    #allocation11 [shape = 's32[2]{0}', space=sflag, size = 0x8, scoped, tag = 'scoped memory for tpu_custom_call.1']
    #allocation12 [shape = 'u8[65536]{0}', space=vmem, size = 0x10000, scoped, tag = 'input window, operand 2, single buffered']
    #allocation13 [shape = 'u8[32768]{0}', space=vmem, size = 0x8000, scoped, tag = 'input window, operand 4, single buffered']
    #allocation14 [shape = 's32[1]{0}', space=sflag, size = 0x4, scoped, tag = 'scoped memory for tpu_custom_call.1']
    #allocation15 [shape = 'u8[196608]{0}', space=vmem, size = 0x30000, scoped, tag = 'input window, operand 8, single buffered']
    #allocation16 [shape = 'u8[32768]{0}', space=vmem, size = 0x8000, scoped, tag = 'input window, operand 10, single buffered']
    #allocation17 [shape = 's32[1]{0}', space=sflag, size = 0x4, scoped, tag = 'scoped memory for tpu_custom_call.1']
    #allocation18 [shape = 'u8[131072]{0}', space=vmem, size = 0x20000, scoped, tag = 'input window, operand 12, single buffered']
    #allocation19 [shape = 'u8[8192]{0}', space=vmem, size = 0x2000, scoped, tag = 'output window, operand 0']
    #allocation20 [shape = 'u8[8192]{0}', space=vmem, size = 0x2000, scoped, tag = 'output window, operand 1']
    #allocation21 [shape = 's32[2]{0}', space=sflag, size = 0x8, scoped, tag = 'scoped memory for tpu_custom_call.1']
    %22 = vsyncpa [#allocation8], 0
    %s23 = scalar_lea.sflag [#allocation8], 1
    %24 = vsyncpa %s23, 0
    %25 = vsyncpa [#allocation11], 0
    %s26 = scalar_lea.sflag [#allocation11], 1
    %27 = vsyncpa %s26, 0
    %28 = vsyncpa [#allocation14], 0
    %29 = vsyncpa [#allocation17], 0
    %30 = vsyncpa [#allocation9], 0
    %s31 = scalar_lea.sflag [#allocation9], 1
    %32 = vsyncpa %s31, 0
    %33 = vsyncpa [#allocation21], 0
    %s34 = scalar_lea.sflag [#allocation21], 1
    %35 = vsyncpa %s34, 0
    loop: start=0, step=1, limit=4
    $region2: #{tpu_custom_call.1} parent=1 // loop_pre_header
      _
    $region3: #{tpu_custom_call.1} parent=1 // loop_header
      %s37 = sphi 0, %s41
      %p38 = scmp.ge.s32.totalorder %s37, 4
      %s47 = sphi 0, %s49
      %s50 = sphi 0, %s47
      %s51 = sphi 0, %s50
      %s67 = sphi 0, %s51
      %s73 = sphi 0, %s75
      %s76 = sphi 0, %s73
      %s77 = sphi 0, %s76
      %s93 = sphi 0, %s77
      %s97 = sphi 0, %s97
      %s99 = sphi 0, %s97
      %s100 = sphi 0, %s99
      %s114 = sphi 0, %s100
      %s118 = sphi 0, %s118
      %s120 = sphi 0, %s118
      %s121 = sphi 0, %s120
      %s135 = sphi 0, %s121
      %s139 = sphi 0, %s139
      %s141 = sphi 0, %s139
      %s142 = sphi 0, %s141
      %s156 = sphi 0, %s142
      %s160 = sphi 0, %s160
      %s162 = sphi 0, %s160
      %s163 = sphi 0, %s162
      %s177 = sphi 0, %s163
      %s181 = sphi 0, %s181
      %s183 = sphi 0, %s181
      %s184 = sphi 0, %s183
      %s198 = sphi 0, %s184
      %s202 = sphi 0, %s202
      %s204 = sphi 0, %s202
      %s205 = sphi 0, %s204
      %s219 = sphi 0, %s205
      %s223 = sphi 0, %s223
      %s225 = sphi 0, %s223
      %s226 = sphi 0, %s225
      %s240 = sphi 0, %s226
      %s244 = sphi 0, %s244
      %s246 = sphi 0, %s244
      %s247 = sphi 0, %s246
      %s261 = sphi 0, %s247
      %s265 = sphi 0, %s265
      %s267 = sphi 0, %s265
      %s268 = sphi 0, %s267
      %s282 = sphi 0, %s268
      %s286 = sphi 0, %s286
      %s288 = sphi 0, %s286
      %s289 = sphi 0, %s288
      %s303 = sphi 0, %s289
      %s307 = sphi 0, %s307
      %s309 = sphi 0, %s307
      %s310 = sphi 0, %s309
      %s324 = sphi 0, %s310
      %s330 = sphi 0, %s332
      %s333 = sphi 0, %s330
      %s334 = sphi 0, %s333
      %s350 = sphi 0, %s334
      %s356 = sphi 0, %s358
      %s359 = sphi 0, %s356
      %s360 = sphi 0, %s359
      %s376 = sphi 0, %s360
    $region4: #{tpu_custom_call.1} parent=1 // loop_header_branch
      %40 = sbr.rel (%p38) target = $region8
    $region5: #{tpu_custom_call.1} parent=1 // loop_body
      %s42 = ssub.s32 %s37, 1
      %s43 = ssub.s32 %s37, 2
      %s44 = sadd.s32 %s37, 1
      %s45 = ssub.s32 %s37, %s44
      %p46 = scmp.eq.s32.totalorder %s45, 0
      %s48 = sadd.s32 %s47, 1
      %s49 = scalar_select %p46, %s47, %s48
      %p52 = pneg %p46
      %p53 = scmp.eq.s32.totalorder %s37, 1
      %p54 = por %p52, %p53
      %p55 = scmp.ne.s32.totalorder %s47, %s50
      %p56 = scmp.eq.s32.totalorder %s37, 0
      %p57 = por %p55, %p56
      %p58 = scmp.ne.s32.totalorder %s47, %s50
      %p59 = scmp.eq.s32.totalorder %s42, 1
      %p60 = por %p58, %p59
      %p61 = scmp.ne.s32.totalorder %s50, %s51
      %p62 = scmp.eq.s32.totalorder %s42, 0
      %p63 = por %p61, %p62
      %p64 = scmp.ne.s32.totalorder %s50, %s51
      %p65 = scmp.eq.s32.totalorder %s43, 1
      %p66 = por %p64, %p65
      %p68 = scmp.ne.s32.totalorder %s51, %s67
      %p69 = scmp.eq.s32.totalorder %s43, 0
      %p70 = por %p68, %p69
      %s71 = ssub.s32 %s37, %s44
      %p72 = scmp.eq.s32.totalorder %s71, 0
      %s74 = sadd.s32 %s73, 1
      %s75 = scalar_select %p72, %s73, %s74
      %p78 = pneg %p72
      %p79 = scmp.eq.s32.totalorder %s37, 1
      %p80 = por %p78, %p79
      %p81 = scmp.ne.s32.totalorder %s73, %s76
      %p82 = scmp.eq.s32.totalorder %s37, 0
      %p83 = por %p81, %p82
      %p84 = scmp.ne.s32.totalorder %s73, %s76
      %p85 = scmp.eq.s32.totalorder %s42, 1
      %p86 = por %p84, %p85
      %p87 = scmp.ne.s32.totalorder %s76, %s77
      %p88 = scmp.eq.s32.totalorder %s42, 0
      %p89 = por %p87, %p88
      %p90 = scmp.ne.s32.totalorder %s76, %s77
      %p91 = scmp.eq.s32.totalorder %s43, 1
      %p92 = por %p90, %p91
      %p94 = scmp.ne.s32.totalorder %s77, %s93
      %p95 = scmp.eq.s32.totalorder %s43, 0
      %p96 = por %p94, %p95
      %s98 = sadd.s32 %s97, 1
      %p101 = scmp.eq.s32.totalorder %s37, 1
      %p102 = scmp.ne.s32.totalorder %s97, %s99
      %p103 = scmp.eq.s32.totalorder %s37, 0
      %p104 = por %p102, %p103
      %p105 = scmp.ne.s32.totalorder %s97, %s99
      %p106 = scmp.eq.s32.totalorder %s42, 1
      %p107 = por %p105, %p106
      %p108 = scmp.ne.s32.totalorder %s99, %s100
      %p109 = scmp.eq.s32.totalorder %s42, 0
      %p110 = por %p108, %p109
      %p111 = scmp.ne.s32.totalorder %s99, %s100
      %p112 = scmp.eq.s32.totalorder %s43, 1
      %p113 = por %p111, %p112
      %p115 = scmp.ne.s32.totalorder %s100, %s114
      %p116 = scmp.eq.s32.totalorder %s43, 0
      %p117 = por %p115, %p116
      %s119 = sadd.s32 %s118, 1
      %p122 = scmp.eq.s32.totalorder %s37, 1
      %p123 = scmp.ne.s32.totalorder %s118, %s120
      %p124 = scmp.eq.s32.totalorder %s37, 0
      %p125 = por %p123, %p124
      %p126 = scmp.ne.s32.totalorder %s118, %s120
      %p127 = scmp.eq.s32.totalorder %s42, 1
      %p128 = por %p126, %p127
      %p129 = scmp.ne.s32.totalorder %s120, %s121
      %p130 = scmp.eq.s32.totalorder %s42, 0
      %p131 = por %p129, %p130
      %p132 = scmp.ne.s32.totalorder %s120, %s121
      %p133 = scmp.eq.s32.totalorder %s43, 1
      %p134 = por %p132, %p133
      %p136 = scmp.ne.s32.totalorder %s121, %s135
      %p137 = scmp.eq.s32.totalorder %s43, 0
      %p138 = por %p136, %p137
      %s140 = sadd.s32 %s139, 1
      %p143 = scmp.eq.s32.totalorder %s37, 1
      %p144 = scmp.ne.s32.totalorder %s139, %s141
      %p145 = scmp.eq.s32.totalorder %s37, 0
      %p146 = por %p144, %p145
      %p147 = scmp.ne.s32.totalorder %s139, %s141
      %p148 = scmp.eq.s32.totalorder %s42, 1
      %p149 = por %p147, %p148
      %p150 = scmp.ne.s32.totalorder %s141, %s142
      %p151 = scmp.eq.s32.totalorder %s42, 0
      %p152 = por %p150, %p151
      %p153 = scmp.ne.s32.totalorder %s141, %s142
      %p154 = scmp.eq.s32.totalorder %s43, 1
      %p155 = por %p153, %p154
      %p157 = scmp.ne.s32.totalorder %s142, %s156
      %p158 = scmp.eq.s32.totalorder %s43, 0
      %p159 = por %p157, %p158
      %s161 = sadd.s32 %s160, 1
      %p164 = scmp.eq.s32.totalorder %s37, 1
      %p165 = scmp.ne.s32.totalorder %s160, %s162
      %p166 = scmp.eq.s32.totalorder %s37, 0
      %p167 = por %p165, %p166
      %p168 = scmp.ne.s32.totalorder %s160, %s162
      %p169 = scmp.eq.s32.totalorder %s42, 1
      %p170 = por %p168, %p169
      %p171 = scmp.ne.s32.totalorder %s162, %s163
      %p172 = scmp.eq.s32.totalorder %s42, 0
      %p173 = por %p171, %p172
      %p174 = scmp.ne.s32.totalorder %s162, %s163
      %p175 = scmp.eq.s32.totalorder %s43, 1
      %p176 = por %p174, %p175
      %p178 = scmp.ne.s32.totalorder %s163, %s177
      %p179 = scmp.eq.s32.totalorder %s43, 0
      %p180 = por %p178, %p179
      %s182 = sadd.s32 %s181, 1
      %p185 = scmp.eq.s32.totalorder %s37, 1
      %p186 = scmp.ne.s32.totalorder %s181, %s183
      %p187 = scmp.eq.s32.totalorder %s37, 0
      %p188 = por %p186, %p187
      %p189 = scmp.ne.s32.totalorder %s181, %s183
      %p190 = scmp.eq.s32.totalorder %s42, 1
      %p191 = por %p189, %p190
      %p192 = scmp.ne.s32.totalorder %s183, %s184
      %p193 = scmp.eq.s32.totalorder %s42, 0
      %p194 = por %p192, %p193
      %p195 = scmp.ne.s32.totalorder %s183, %s184
      %p196 = scmp.eq.s32.totalorder %s43, 1
      %p197 = por %p195, %p196
      %p199 = scmp.ne.s32.totalorder %s184, %s198
      %p200 = scmp.eq.s32.totalorder %s43, 0
      %p201 = por %p199, %p200
      %s203 = sadd.s32 %s202, 1
      %p206 = scmp.eq.s32.totalorder %s37, 1
      %p207 = scmp.ne.s32.totalorder %s202, %s204
      %p208 = scmp.eq.s32.totalorder %s37, 0
      %p209 = por %p207, %p208
      %p210 = scmp.ne.s32.totalorder %s202, %s204
      %p211 = scmp.eq.s32.totalorder %s42, 1
      %p212 = por %p210, %p211
      %p213 = scmp.ne.s32.totalorder %s204, %s205
      %p214 = scmp.eq.s32.totalorder %s42, 0
      %p215 = por %p213, %p214
      %p216 = scmp.ne.s32.totalorder %s204, %s205
      %p217 = scmp.eq.s32.totalorder %s43, 1
      %p218 = por %p216, %p217
      %p220 = scmp.ne.s32.totalorder %s205, %s219
      %p221 = scmp.eq.s32.totalorder %s43, 0
      %p222 = por %p220, %p221
      %s224 = sadd.s32 %s223, 1
      %p227 = scmp.eq.s32.totalorder %s37, 1
      %p228 = scmp.ne.s32.totalorder %s223, %s225
      %p229 = scmp.eq.s32.totalorder %s37, 0
      %p230 = por %p228, %p229
      %p231 = scmp.ne.s32.totalorder %s223, %s225
      %p232 = scmp.eq.s32.totalorder %s42, 1
      %p233 = por %p231, %p232
      %p234 = scmp.ne.s32.totalorder %s225, %s226
      %p235 = scmp.eq.s32.totalorder %s42, 0
      %p236 = por %p234, %p235
      %p237 = scmp.ne.s32.totalorder %s225, %s226
      %p238 = scmp.eq.s32.totalorder %s43, 1
      %p239 = por %p237, %p238
      %p241 = scmp.ne.s32.totalorder %s226, %s240
      %p242 = scmp.eq.s32.totalorder %s43, 0
      %p243 = por %p241, %p242
      %s245 = sadd.s32 %s244, 1
      %p248 = scmp.eq.s32.totalorder %s37, 1
      %p249 = scmp.ne.s32.totalorder %s244, %s246
      %p250 = scmp.eq.s32.totalorder %s37, 0
      %p251 = por %p249, %p250
      %p252 = scmp.ne.s32.totalorder %s244, %s246
      %p253 = scmp.eq.s32.totalorder %s42, 1
      %p254 = por %p252, %p253
      %p255 = scmp.ne.s32.totalorder %s246, %s247
      %p256 = scmp.eq.s32.totalorder %s42, 0
      %p257 = por %p255, %p256
      %p258 = scmp.ne.s32.totalorder %s246, %s247
      %p259 = scmp.eq.s32.totalorder %s43, 1
      %p260 = por %p258, %p259
      %p262 = scmp.ne.s32.totalorder %s247, %s261
      %p263 = scmp.eq.s32.totalorder %s43, 0
      %p264 = por %p262, %p263
      %s266 = sadd.s32 %s265, 1
      %p269 = scmp.eq.s32.totalorder %s37, 1
      %p270 = scmp.ne.s32.totalorder %s265, %s267
      %p271 = scmp.eq.s32.totalorder %s37, 0
      %p272 = por %p270, %p271
      %p273 = scmp.ne.s32.totalorder %s265, %s267
      %p274 = scmp.eq.s32.totalorder %s42, 1
      %p275 = por %p273, %p274
      %p276 = scmp.ne.s32.totalorder %s267, %s268
      %p277 = scmp.eq.s32.totalorder %s42, 0
      %p278 = por %p276, %p277
      %p279 = scmp.ne.s32.totalorder %s267, %s268
      %p280 = scmp.eq.s32.totalorder %s43, 1
      %p281 = por %p279, %p280
      %p283 = scmp.ne.s32.totalorder %s268, %s282
      %p284 = scmp.eq.s32.totalorder %s43, 0
      %p285 = por %p283, %p284
      %s287 = sadd.s32 %s286, 1
      %p290 = scmp.eq.s32.totalorder %s37, 1
      %p291 = scmp.ne.s32.totalorder %s286, %s288
      %p292 = scmp.eq.s32.totalorder %s37, 0
      %p293 = por %p291, %p292
      %p294 = scmp.ne.s32.totalorder %s286, %s288
      %p295 = scmp.eq.s32.totalorder %s42, 1
      %p296 = por %p294, %p295
      %p297 = scmp.ne.s32.totalorder %s288, %s289
      %p298 = scmp.eq.s32.totalorder %s42, 0
      %p299 = por %p297, %p298
      %p300 = scmp.ne.s32.totalorder %s288, %s289
      %p301 = scmp.eq.s32.totalorder %s43, 1
      %p302 = por %p300, %p301
      %p304 = scmp.ne.s32.totalorder %s289, %s303
      %p305 = scmp.eq.s32.totalorder %s43, 0
      %p306 = por %p304, %p305
      %s308 = sadd.s32 %s307, 1
      %p311 = scmp.eq.s32.totalorder %s37, 1
      %p312 = scmp.ne.s32.totalorder %s307, %s309
      %p313 = scmp.eq.s32.totalorder %s37, 0
      %p314 = por %p312, %p313
      %p315 = scmp.ne.s32.totalorder %s307, %s309
      %p316 = scmp.eq.s32.totalorder %s42, 1
      %p317 = por %p315, %p316
      %p318 = scmp.ne.s32.totalorder %s309, %s310
      %p319 = scmp.eq.s32.totalorder %s42, 0
      %p320 = por %p318, %p319
      %p321 = scmp.ne.s32.totalorder %s309, %s310
      %p322 = scmp.eq.s32.totalorder %s43, 1
      %p323 = por %p321, %p322
      %p325 = scmp.ne.s32.totalorder %s310, %s324
      %p326 = scmp.eq.s32.totalorder %s43, 0
      %p327 = por %p325, %p326
      %s328 = ssub.s32 %s37, %s44
      %p329 = scmp.eq.s32.totalorder %s328, 0
      %s331 = sadd.s32 %s330, 1
      %s332 = scalar_select %p329, %s330, %s331
      %p335 = pneg %p329
      %p336 = scmp.eq.s32.totalorder %s37, 1
      %p337 = por %p335, %p336
      %p338 = scmp.ne.s32.totalorder %s330, %s333
      %p339 = scmp.eq.s32.totalorder %s37, 0
      %p340 = por %p338, %p339
      %p341 = scmp.ne.s32.totalorder %s330, %s333
      %p342 = scmp.eq.s32.totalorder %s42, 1
      %p343 = por %p341, %p342
      %p344 = scmp.ne.s32.totalorder %s333, %s334
      %p345 = scmp.eq.s32.totalorder %s42, 0
      %p346 = por %p344, %p345
      %p347 = scmp.ne.s32.totalorder %s333, %s334
      %p348 = scmp.eq.s32.totalorder %s43, 1
      %p349 = por %p347, %p348
      %p351 = scmp.ne.s32.totalorder %s334, %s350
      %p352 = scmp.eq.s32.totalorder %s43, 0
      %p353 = por %p351, %p352
      %s354 = ssub.s32 %s37, %s44
      %p355 = scmp.eq.s32.totalorder %s354, 0
      %s357 = sadd.s32 %s356, 1
      %s358 = scalar_select %p355, %s356, %s357
      %p361 = pneg %p355
      %p362 = scmp.eq.s32.totalorder %s37, 1
      %p363 = por %p361, %p362
      %p364 = scmp.ne.s32.totalorder %s356, %s359
      %p365 = scmp.eq.s32.totalorder %s37, 0
      %p366 = por %p364, %p365
      %p367 = scmp.ne.s32.totalorder %s356, %s359
      %p368 = scmp.eq.s32.totalorder %s42, 1
      %p369 = por %p367, %p368
      %p370 = scmp.ne.s32.totalorder %s359, %s360
      %p371 = scmp.eq.s32.totalorder %s42, 0
      %p372 = por %p370, %p371
      %p373 = scmp.ne.s32.totalorder %s359, %s360
      %p374 = scmp.eq.s32.totalorder %s43, 1
      %p375 = por %p373, %p374
      %p377 = scmp.ne.s32.totalorder %s360, %s376
      %p378 = scmp.eq.s32.totalorder %s43, 0
      %p379 = por %p377, %p378
      %p380 = scmp.le.s32.totalorder 1, %s37
      %p381 = scmp.lt.s32.totalorder %s37, 3
      %p382 = pnand %p380, %p381
      %p383 = pneg %p382
      // Predicated region
      $region9: #{tpu_custom_call.1} parent=5 // pred_check
        _
      $region10: #{tpu_custom_call.1} parent=5 // pred_check_branch
        %385 = sbr.rel (%p382) target = $region12
      $region11: #{tpu_custom_call.1} parent=5 // pred_region
        %s386 = ssub.s32 %s37, 1
        // Predicated region
        $region13: #{tpu_custom_call.1} parent=11 // pred_check
          %p387 = pneg %p110
        $region14: #{tpu_custom_call.1} parent=11 // pred_check_branch
          %389 = sbr.rel (%p387) target = $region16
        $region15: #{tpu_custom_call.1} parent=11 // pred_region
          %s391 = ssub.s32 2048, 2048
          %392 = vsyncadd [#allocation11], %s391
          %s393 = sshll.u32 [#allocation12], 4
          %s394 = int_to_ptr.vmem [resolvable:$true] %s393
          %399 = dma.hbm_to_vmem [thread:$0]  %s2, 2048, %s394, [#allocation11], 128, 128, 8
        $region16: #{tpu_custom_call.1} parent=11 // pred_fallthru
          _
        // Predicated region
        $region17: #{tpu_custom_call.1} parent=11 // pred_check
          %p400 = pneg %p131
        $region18: #{tpu_custom_call.1} parent=11 // pred_check_branch
          %402 = sbr.rel (%p400) target = $region20
        $region19: #{tpu_custom_call.1} parent=11 // pred_region
          _
        $region20: #{tpu_custom_call.1} parent=11 // pred_fallthru
          _
        // Predicated region
        $region21: #{tpu_custom_call.1} parent=11 // pred_check
          %p403 = pneg %p152
        $region22: #{tpu_custom_call.1} parent=11 // pred_check_branch
          %405 = sbr.rel (%p403) target = $region24
        $region23: #{tpu_custom_call.1} parent=11 // pred_region
          %s407 = ssub.s32 1024, 1024
          %408 = vsyncadd [#allocation14], %s407
          %s409 = sshll.u32 [#allocation13], 4
          %s410 = int_to_ptr.vmem [resolvable:$true] %s409
          %415 = dma.hbm_to_vmem [thread:$0]  %s4, 1024, %s410, [#allocation14], 64, 64, 4
        $region24: #{tpu_custom_call.1} parent=11 // pred_fallthru
          _
        // Predicated region
        $region25: #{tpu_custom_call.1} parent=11 // pred_check
          %p416 = pneg %p173
        $region26: #{tpu_custom_call.1} parent=11 // pred_check_branch
          %418 = sbr.rel (%p416) target = $region28
        $region27: #{tpu_custom_call.1} parent=11 // pred_region
          _
        $region28: #{tpu_custom_call.1} parent=11 // pred_fallthru
          _
        // Predicated region
        $region29: #{tpu_custom_call.1} parent=11 // pred_check
          %p419 = pneg %p194
        $region30: #{tpu_custom_call.1} parent=11 // pred_check_branch
          %421 = sbr.rel (%p419) target = $region32
        $region31: #{tpu_custom_call.1} parent=11 // pred_region
          _
        $region32: #{tpu_custom_call.1} parent=11 // pred_fallthru
          _
        // Predicated region
        $region33: #{tpu_custom_call.1} parent=11 // pred_check
          %p422 = pneg %p215
        $region34: #{tpu_custom_call.1} parent=11 // pred_check_branch
          %424 = sbr.rel (%p422) target = $region36
        $region35: #{tpu_custom_call.1} parent=11 // pred_region
          _
        $region36: #{tpu_custom_call.1} parent=11 // pred_fallthru
          _
        // Predicated region
        $region37: #{tpu_custom_call.1} parent=11 // pred_check
          %p425 = pneg %p236
        $region38: #{tpu_custom_call.1} parent=11 // pred_check_branch
          %427 = sbr.rel (%p425) target = $region40
        $region39: #{tpu_custom_call.1} parent=11 // pred_region
          %s429 = ssub.s32 6144, 6144
          %430 = vsyncadd [#allocation14], %s429
          %s431 = sshll.u32 [#allocation15], 4
          %s432 = int_to_ptr.vmem [resolvable:$true] %s431
          %437 = dma.hbm_to_vmem [thread:$0]  %s8, 6144, %s432, [#allocation14], 384, 384, 24
        $region40: #{tpu_custom_call.1} parent=11 // pred_fallthru
          _
        // Predicated region
        $region41: #{tpu_custom_call.1} parent=11 // pred_check
          %p438 = pneg %p257
        $region42: #{tpu_custom_call.1} parent=11 // pred_check_branch
          %440 = sbr.rel (%p438) target = $region44
        $region43: #{tpu_custom_call.1} parent=11 // pred_region
          _
        $region44: #{tpu_custom_call.1} parent=11 // pred_fallthru
          _
        // Predicated region
        $region45: #{tpu_custom_call.1} parent=11 // pred_check
          %p441 = pneg %p278
        $region46: #{tpu_custom_call.1} parent=11 // pred_check_branch
          %443 = sbr.rel (%p441) target = $region48
        $region47: #{tpu_custom_call.1} parent=11 // pred_region
          %s445 = ssub.s32 1024, 1024
          %446 = vsyncadd [#allocation17], %s445
          %s447 = sshll.u32 [#allocation16], 4
          %s448 = int_to_ptr.vmem [resolvable:$true] %s447
          %453 = dma.hbm_to_vmem [thread:$0]  %s10, 1024, %s448, [#allocation17], 256, 256, 16
        $region48: #{tpu_custom_call.1} parent=11 // pred_fallthru
          _
        // Predicated region
        $region49: #{tpu_custom_call.1} parent=11 // pred_check
          %p454 = pneg %p299
        $region50: #{tpu_custom_call.1} parent=11 // pred_check_branch
          %456 = sbr.rel (%p454) target = $region52
        $region51: #{tpu_custom_call.1} parent=11 // pred_region
          _
        $region52: #{tpu_custom_call.1} parent=11 // pred_fallthru
          _
        // Predicated region
        $region53: #{tpu_custom_call.1} parent=11 // pred_check
          %p457 = pneg %p320
        $region54: #{tpu_custom_call.1} parent=11 // pred_check_branch
          %459 = sbr.rel (%p457) target = $region56
        $region55: #{tpu_custom_call.1} parent=11 // pred_region
          %s461 = ssub.s32 4096, 4096
          %462 = vsyncadd [#allocation17], %s461
          %s463 = sshll.u32 [#allocation18], 4
          %s464 = int_to_ptr.vmem [resolvable:$true] %s463
          %469 = dma.hbm_to_vmem [thread:$0]  %s12, 4096, %s464, [#allocation17], 256, 256, 16
        $region56: #{tpu_custom_call.1} parent=11 // pred_fallthru
          _
      $region12: #{tpu_custom_call.1} parent=5 // pred_fallthru
        _
      %p470 = scmp.lt.s32.totalorder %s37, 2
      // Predicated region
      $region57: #{tpu_custom_call.1} parent=5 // pred_check
        %p471 = pneg %p470
      $region58: #{tpu_custom_call.1} parent=5 // pred_check_branch
        %473 = sbr.rel (%p471) target = $region60
      $region59: #{tpu_custom_call.1} parent=5 // pred_region
        // Predicated region
        $region61: #{tpu_custom_call.1} parent=59 // pred_check
          %p474 = pneg %p57
        $region62: #{tpu_custom_call.1} parent=59 // pred_check_branch
          %476 = sbr.rel (%p474) target = $region64
        $region63: #{tpu_custom_call.1} parent=59 // pred_region
          %s477 = sand.u32 %s47, 1
          %s478 = scalar_lea.sflag [#allocation8], %s477
          %s479 = sand.u32 %s47, 1
          %s480 = smul.addr %s479, 64
          %s481 = scalar_lea.vmem [#allocation7], %s480
          %s483 = ssub.s32 1024, 1024
          %484 = vsyncadd %s478, %s483
          %s485 = smul.addr %s37, 16
          %s486 = smul.addr %s485, 64
          %s487 = scalar_lea.hbm %s0, %s486
          %s488 = sshll.u32 %s481, 4
          %s489 = int_to_ptr.vmem [resolvable:$true] %s488
          %494 = dma.hbm_to_vmem [thread:$0]  %s487, 1024, %s489, %s478, 64, 64, 4
        $region64: #{tpu_custom_call.1} parent=59 // pred_fallthru
          _
        // Predicated region
        $region65: #{tpu_custom_call.1} parent=59 // pred_check
          %p495 = pneg %p83
        $region66: #{tpu_custom_call.1} parent=59 // pred_check_branch
          %497 = sbr.rel (%p495) target = $region68
        $region67: #{tpu_custom_call.1} parent=59 // pred_region
          %s498 = sand.u32 %s37, 1
          %s499 = scalar_lea.sflag [#allocation11], %s498
          %s500 = sand.u32 %s73, 1
          %s501 = smul.addr %s500, 4
          %s502 = scalar_lea.vmem [#allocation10], %s501
          %s504 = ssub.s32 64, 64
          %505 = vsyncadd %s499, %s504
          %s506 = smul.addr %s37, 64
          %s507 = scalar_lea.hbm %s1, %s506
          %s509 = sshll.u32 %s502, 4
          %s510 = int_to_ptr.vmem [resolvable:$true] %s509
          %512 = dma.hbm_to_vmem [thread:$0]  %s507, 64, %s510, %s499
        $region68: #{tpu_custom_call.1} parent=59 // pred_fallthru
          _
      $region60: #{tpu_custom_call.1} parent=5 // pred_fallthru
        _
      %p513 = scmp.le.s32.totalorder 1, %s37
      %p514 = scmp.lt.s32.totalorder %s37, 3
      %p515 = pnand %p513, %p514
      %p516 = pneg %p515
      // Predicated region
      $region69: #{tpu_custom_call.1} parent=5 // pred_check
        _
      $region70: #{tpu_custom_call.1} parent=5 // pred_check_branch
        %518 = sbr.rel (%p515) target = $region72
      $region71: #{tpu_custom_call.1} parent=5 // pred_region
        %s519 = ssub.s32 %s37, 1
        %s520 = sand.u32 %s50, 1
        %s521 = scalar_lea.sflag [#allocation8], %s520
        %s522 = sand.u32 %s50, 1
        %s523 = smul.addr %s522, 64
        %s524 = scalar_lea.vmem [#allocation7], %s523
        // Predicated region
        $region73: #{tpu_custom_call.1} parent=71 // pred_check
          %p525 = pneg %p63
        $region74: #{tpu_custom_call.1} parent=71 // pred_check_branch
          %527 = sbr.rel (%p525) target = $region76
        $region75: #{tpu_custom_call.1} parent=71 // pred_region
          %528 = dma.done %s521, 1024
        $region76: #{tpu_custom_call.1} parent=71 // pred_fallthru
          _
        %s529 = sand.u32 %s42, 1
        %s530 = scalar_lea.sflag [#allocation11], %s529
        %s531 = sand.u32 %s76, 1
        %s532 = smul.addr %s531, 4
        %s533 = scalar_lea.vmem [#allocation10], %s532
        // Predicated region
        $region77: #{tpu_custom_call.1} parent=71 // pred_check
          %p534 = pneg %p89
        $region78: #{tpu_custom_call.1} parent=71 // pred_check_branch
          %536 = sbr.rel (%p534) target = $region80
        $region79: #{tpu_custom_call.1} parent=71 // pred_region
          %537 = dma.done %s530, 64
        $region80: #{tpu_custom_call.1} parent=71 // pred_fallthru
          _
        // Predicated region
        $region81: #{tpu_custom_call.1} parent=71 // pred_check
          %p538 = pneg %p110
        $region82: #{tpu_custom_call.1} parent=71 // pred_check_branch
          %540 = sbr.rel (%p538) target = $region84
        $region83: #{tpu_custom_call.1} parent=71 // pred_region
          %541 = dma.done [#allocation11], 2048
        $region84: #{tpu_custom_call.1} parent=71 // pred_fallthru
          _
        // Predicated region
        $region85: #{tpu_custom_call.1} parent=71 // pred_check
          %p542 = pneg %p152
        $region86: #{tpu_custom_call.1} parent=71 // pred_check_branch
          %544 = sbr.rel (%p542) target = $region88
        $region87: #{tpu_custom_call.1} parent=71 // pred_region
          %545 = dma.done [#allocation14], 1024
        $region88: #{tpu_custom_call.1} parent=71 // pred_fallthru
          _
        // Predicated region
        $region89: #{tpu_custom_call.1} parent=71 // pred_check
          %p546 = pneg %p236
        $region90: #{tpu_custom_call.1} parent=71 // pred_check_branch
          %548 = sbr.rel (%p546) target = $region92
        $region91: #{tpu_custom_call.1} parent=71 // pred_region
          %549 = dma.done [#allocation14], 6144
        $region92: #{tpu_custom_call.1} parent=71 // pred_fallthru
          _
        // Predicated region
        $region93: #{tpu_custom_call.1} parent=71 // pred_check
          %p550 = pneg %p278
        $region94: #{tpu_custom_call.1} parent=71 // pred_check_branch
          %552 = sbr.rel (%p550) target = $region96
        $region95: #{tpu_custom_call.1} parent=71 // pred_region
          %553 = dma.done [#allocation17], 1024
        $region96: #{tpu_custom_call.1} parent=71 // pred_fallthru
          _
        // Predicated region
        $region97: #{tpu_custom_call.1} parent=71 // pred_check
          %p554 = pneg %p320
        $region98: #{tpu_custom_call.1} parent=71 // pred_check_branch
          %556 = sbr.rel (%p554) target = $region100
        $region99: #{tpu_custom_call.1} parent=71 // pred_region
          %557 = dma.done [#allocation17], 4096
        $region100: #{tpu_custom_call.1} parent=71 // pred_fallthru
          _
        %s558 = sand.u32 %s50, 1
        %s559 = scalar_lea.sflag [#allocation8], %s558
        %s560 = sand.u32 %s50, 1
        %s561 = smul.addr %s560, 64
        %s562 = scalar_lea.vmem [#allocation7], %s561
        %p563 = pneg %p63
        %p564 = pneg %p60
        %s565 = sand.u32 %s42, 1
        %s566 = scalar_lea.sflag [#allocation11], %s565
        %s567 = sand.u32 %s76, 1
        %s568 = smul.addr %s567, 4
        %s569 = scalar_lea.vmem [#allocation10], %s568
        %p570 = pneg %p89
        %p571 = pneg %p86
        %p572 = pneg %p110
        %p573 = pneg %p107
        %p574 = pneg %p131
        %p575 = pneg %p128
        %p576 = pneg %p152
        %p577 = pneg %p149
        %p578 = pneg %p173
        %p579 = pneg %p170
        %p580 = pneg %p194
        %p581 = pneg %p191
        %p582 = pneg %p215
        %p583 = pneg %p212
        %p584 = pneg %p236
        %p585 = pneg %p233
        %p586 = pneg %p257
        %p587 = pneg %p254
        %p588 = pneg %p278
        %p589 = pneg %p275
        %p590 = pneg %p299
        %p591 = pneg %p296
        %p592 = pneg %p320
        %p593 = pneg %p317
        %p594 = pneg %p346
        %p595 = pneg %p343
        %s596 = sand.u32 %s333, 1
        %s597 = scalar_lea.sflag [#allocation9], %s596
        %s598 = sand.u32 %s333, 1
        %s599 = smul.addr %s598, 8
        %s600 = scalar_lea.vmem [#allocation19], %s599
        %p601 = pneg %p372
        %p602 = pneg %p369
        %s603 = sand.u32 %s359, 1
        %s604 = scalar_lea.sflag [#allocation21], %s603
        %s605 = sand.u32 %s359, 1
        %s606 = smul.addr %s605, 8
        %s607 = scalar_lea.vmem [#allocation20], %s606
        %v609 = vld [vmem:[%s524] sm:$0xf]
        %v610 = vld [vmem:[%s524 + $0x4] sm:$0xf]
        %v611 = vld [vmem:[%s524 + $0x8] sm:$0xf]
        %v612 = vld [vmem:[%s524 + $0xc] sm:$0xf]
        %v613 = vld [vmem:[%s524 + $0x10] sm:$0xf]
        %v614 = vld [vmem:[%s524 + $0x14] sm:$0xf]
        %v615 = vld [vmem:[%s524 + $0x18] sm:$0xf]
        %v616 = vld [vmem:[%s524 + $0x1c] sm:$0xf]
        %v617 = vld [vmem:[%s524 + $0x20] sm:$0xf]
        %v618 = vld [vmem:[%s524 + $0x24] sm:$0xf]
        %v619 = vld [vmem:[%s524 + $0x28] sm:$0xf]
        %v620 = vld [vmem:[%s524 + $0x2c] sm:$0xf]
        %v621 = vld [vmem:[%s524 + $0x30] sm:$0xf]
        %v622 = vld [vmem:[%s524 + $0x34] sm:$0xf]
        %v623 = vld [vmem:[%s524 + $0x38] sm:$0xf]
        %v624 = vld [vmem:[%s524 + $0x3c] sm:$0xf]
        %v625 = vunpack.c.l.bf16 %v609
        %v626 = vunpack.c.l.bf16 %v610
        %v627 = vunpack.c.l.bf16 %v611
        %v628 = vunpack.c.l.bf16 %v612
        %v629 = vunpack.c.l.bf16 %v613
        %v630 = vunpack.c.l.bf16 %v614
        %v631 = vunpack.c.l.bf16 %v615
        %v632 = vunpack.c.l.bf16 %v616
        %v633 = vunpack.c.l.bf16 %v617
        %v634 = vunpack.c.l.bf16 %v618
        %v635 = vunpack.c.l.bf16 %v619
        %v636 = vunpack.c.l.bf16 %v620
        %v637 = vunpack.c.l.bf16 %v621
        %v638 = vunpack.c.l.bf16 %v622
        %v639 = vunpack.c.l.bf16 %v623
        %v640 = vunpack.c.l.bf16 %v624
        %v641 = vadd.f32 %v625, %v626
        %v642 = vadd.f32 %v641, %v627
        %v643 = vadd.f32 %v642, %v628
        %v644 = vadd.f32 %v643, %v629
        %v645 = vadd.f32 %v644, %v630
        %v646 = vadd.f32 %v645, %v631
        %v647 = vadd.f32 %v646, %v632
        %v648 = vadd.f32 %v647, %v633
        %v649 = vadd.f32 %v648, %v634
        %v650 = vadd.f32 %v649, %v635
        %v651 = vadd.f32 %v650, %v636
        %v652 = vadd.f32 %v651, %v637
        %v653 = vadd.f32 %v652, %v638
        %v654 = vadd.f32 %v653, %v639
        %v655 = vadd.f32 %v654, %v640
        %v656 = vrot.slane %v655, 4
        %v657 = vadd.f32 %v655, %v656
        %v658 = vrot.slane %v657, 2
        %v659 = vadd.f32 %v657, %v658
        %v660 = vrot.slane %v659, 1
        %v661 = vadd.f32 %v659, %v660
        %v662 = vmul.f32 %v661, 0.0625
        %v663 = vpack.c.bf16 %v662, %v662
        %v664 = vld [vmem:[#allocation12] sm:$0xff]
        %v665 = vld [vmem:[#allocation12 + $0x8] sm:$0xff]
        %v666 = vld [vmem:[#allocation12 + $0x10] sm:$0xff]
        %v667 = vld [vmem:[#allocation12 + $0x18] sm:$0xff]
        %v668 = vld [vmem:[#allocation12 + $0x20] sm:$0xff]
        %v669 = vld [vmem:[#allocation12 + $0x28] sm:$0xff]
        %v670 = vld [vmem:[#allocation12 + $0x30] sm:$0xff]
        %v671 = vld [vmem:[#allocation12 + $0x38] sm:$0xff]
        %v672 = vld [vmem:[#allocation12 + $0x40] sm:$0xff]
        %v673 = vld [vmem:[#allocation12 + $0x48] sm:$0xff]
        %v674 = vld [vmem:[#allocation12 + $0x50] sm:$0xff]
        %v675 = vld [vmem:[#allocation12 + $0x58] sm:$0xff]
        %v676 = vld [vmem:[#allocation12 + $0x60] sm:$0xff]
        %v677 = vld [vmem:[#allocation12 + $0x68] sm:$0xff]
        %v678 = vld [vmem:[#allocation12 + $0x70] sm:$0xff]
        %v679 = vld [vmem:[#allocation12 + $0x78] sm:$0xff]
        %v680 = vld [vmem:[%s3] sm:$0x3]
        %v697 = vunpack.c.l.b16 %v664
        %v698 = vunpack.c.h.b16 %v664
        %v699 = vunpack.c.l.b16 %v665
        %v700 = vunpack.c.h.b16 %v665
        %v701 = vunpack.c.l.b16 %v666
        %v702 = vunpack.c.h.b16 %v666
        %v703 = vunpack.c.l.b16 %v667
        %v704 = vunpack.c.h.b16 %v667
        %v705 = vunpack.c.l.b16 %v668
        %v706 = vunpack.c.h.b16 %v668
        %v707 = vunpack.c.l.b16 %v669
        %v708 = vunpack.c.h.b16 %v669
        %v709 = vunpack.c.l.b16 %v670
        %v710 = vunpack.c.h.b16 %v670
        %v711 = vunpack.c.l.b16 %v671
        %v712 = vunpack.c.h.b16 %v671
        %v713 = vunpack.c.l.b16 %v672
        %v714 = vunpack.c.h.b16 %v672
        %v715 = vunpack.c.l.b16 %v673
        %v716 = vunpack.c.h.b16 %v673
        %v717 = vunpack.c.l.b16 %v674
        %v718 = vunpack.c.h.b16 %v674
        %v719 = vunpack.c.l.b16 %v675
        %v720 = vunpack.c.h.b16 %v675
        %v721 = vunpack.c.l.b16 %v676
        %v722 = vunpack.c.h.b16 %v676
        %v723 = vunpack.c.l.b16 %v677
        %v724 = vunpack.c.h.b16 %v677
        %v725 = vunpack.c.l.b16 %v678
        %v726 = vunpack.c.h.b16 %v678
        %v727 = vunpack.c.l.b16 %v679
        %v728 = vunpack.c.h.b16 %v679
        %v729 = vpack.c.b16 %v699, %v697
        %v730 = vpack.c.b16 %v700, %v698
        %v731 = vpack.c.b16 %v703, %v701
        %v732 = vpack.c.b16 %v704, %v702
        %v733 = vpack.c.b16 %v707, %v705
        %v734 = vpack.c.b16 %v708, %v706
        %v735 = vpack.c.b16 %v711, %v709
        %v736 = vpack.c.b16 %v712, %v710
        %v737 = vpack.c.b16 %v715, %v713
        %v738 = vpack.c.b16 %v716, %v714
        %v739 = vpack.c.b16 %v719, %v717
        %v740 = vpack.c.b16 %v720, %v718
        %v741 = vpack.c.b16 %v723, %v721
        %v742 = vpack.c.b16 %v724, %v722
        %v743 = vpack.c.b16 %v727, %v725
        %v744 = vpack.c.b16 %v728, %v726
        %v762 = vlaneseq
        %v763 = vshrl.u32 %v762, 7
        %v764 = vsub.s32 0, %v763
        %v765 = vrot.slane %v680, %v764
        %v766 = vlaneseq
        %v767 = vshrl.u32 %v766, 7
        %v768 = vsub.s32 1, %v767
        %v769 = vrot.slane %v680, %v768
        %772 = vmatprep.subr.bf16.mxu0 %v730
        %773 = vmatpush1.bf16.msra.mxu0 %v729
        %774 = vmatprep.subr.bf16.mxu0 %v732
        %775 = vmatpush1.bf16.msra.mxu0 %v731
        %776 = vmatprep.subr.bf16.mxu0 %v734
        %777 = vmatpush1.bf16.msra.mxu0 %v733
        %778 = vmatprep.subr.bf16.mxu0 %v736
        %779 = vmatpush1.bf16.msra.mxu0 %v735
        %780 = vmatprep.subr.bf16.mxu0 %v738
        %781 = vmatpush1.bf16.msra.mxu0 %v737
        %782 = vmatprep.subr.bf16.mxu0 %v740
        %783 = vmatpush1.bf16.msra.mxu0 %v739
        %784 = vmatprep.subr.bf16.mxu0 %v742
        %785 = vmatpush1.bf16.msra.mxu0 %v741
        %786 = vmatprep.subr.bf16.mxu0 %v744
        %787 = vmatpush1.bf16.msra.mxu0 %v743
        %788 = vmatprep.subr.bf16.mxu0 0
        %789 = vmatpush1.bf16.msra.mxu0 0
        %790 = vmatprep.subr.bf16.mxu0 0
        %791 = vmatpush1.bf16.msra.mxu0 0
        %792 = vmatprep.subr.bf16.mxu0 0
        %793 = vmatpush1.bf16.msra.mxu0 0
        %794 = vmatprep.subr.bf16.mxu0 0
        %795 = vmatpush1.bf16.msra.mxu0 0
        %796 = vmatprep.subr.bf16.mxu0 0
        %797 = vmatpush1.bf16.msra.mxu0 0
        %798 = vmatprep.subr.bf16.mxu0 0
        %799 = vmatpush1.bf16.msra.mxu0 0
        %800 = vmatprep.subr.bf16.mxu0 0
        %801 = vmatpush1.bf16.msra.mxu0 0
        %802 = vmatprep.subr.bf16.mxu0 0
        %803 = vmatpush1.bf16.msra.mxu0 0
        %804 = vmatprep.mubr.bf16.mxu0 0
        %805 = vmatmul.mubr.bf16.gmra.mrb[0].mxu0 %v663
        %v806 = vpop.f32.mrb[0].mxu0
        %v807 = vadd.f32 %v765, %v806
        %v808 = vpop.f32.mrb[0].mxu0
        %v809 = vadd.f32 %v769, %v808
        %v810 = vpop.f32.mrb[0].mxu0
        %v811 = vpop.f32.mrb[0].mxu0
        %812 = vdwg.mxu0
        %813 = vst [vmem:[#allocation2] sm:$0x1] %v807
        %814 = vst [vmem:[#allocation3] sm:$0x1] %v809
        %v815 = vld [vmem:[#allocation13] sm:$0xf]
        %v816 = vld [vmem:[#allocation13 + $0x4] sm:$0xf]
        %v817 = vld [vmem:[#allocation13 + $0x8] sm:$0xf]
        %v818 = vld [vmem:[#allocation13 + $0xc] sm:$0xf]
        %v819 = vld [vmem:[#allocation13 + $0x10] sm:$0xf]
        %v820 = vld [vmem:[#allocation13 + $0x14] sm:$0xf]
        %v821 = vld [vmem:[#allocation13 + $0x18] sm:$0xf]
        %v822 = vld [vmem:[#allocation13 + $0x1c] sm:$0xf]
        %v823 = vld [vmem:[#allocation13 + $0x20] sm:$0xf]
        %v824 = vld [vmem:[#allocation13 + $0x24] sm:$0xf]
        %v825 = vld [vmem:[#allocation13 + $0x28] sm:$0xf]
        %v826 = vld [vmem:[#allocation13 + $0x2c] sm:$0xf]
        %v827 = vld [vmem:[#allocation13 + $0x30] sm:$0xf]
        %v828 = vld [vmem:[#allocation13 + $0x34] sm:$0xf]
        %v829 = vld [vmem:[#allocation13 + $0x38] sm:$0xf]
        %v830 = vld [vmem:[#allocation13 + $0x3c] sm:$0xf]
        %v831 = vld [vmem:[%s5] sm:$0x1]
        %v833 = vlaneseq
        %v834 = vshrl.u32 %v833, 7
        %v835 = vsub.s32 0, %v834
        %v836 = vrot.slane %v831, %v835
        %v854 = vunpack.c.l.b16 %v609
        %v855 = vunpack.c.l.b16 %v610
        %v856 = vunpack.c.l.b16 %v611
        %v857 = vunpack.c.l.b16 %v612
        %v858 = vunpack.c.l.b16 %v613
        %v859 = vunpack.c.l.b16 %v614
        %v860 = vunpack.c.l.b16 %v615
        %v861 = vunpack.c.l.b16 %v616
        %v862 = vunpack.c.l.b16 %v617
        %v863 = vunpack.c.l.b16 %v618
        %v864 = vunpack.c.l.b16 %v619
        %v865 = vunpack.c.l.b16 %v620
        %v866 = vunpack.c.l.b16 %v621
        %v867 = vunpack.c.l.b16 %v622
        %v868 = vunpack.c.l.b16 %v623
        %v869 = vunpack.c.l.b16 %v624
        %v870 = vpack.c.b16 %v855, %v854
        %v871 = vpack.c.b16 %v857, %v856
        %v872 = vpack.c.b16 %v859, %v858
        %v873 = vpack.c.b16 %v861, %v860
        %v874 = vpack.c.b16 %v863, %v862
        %v875 = vpack.c.b16 %v865, %v864
        %v876 = vpack.c.b16 %v867, %v866
        %v877 = vpack.c.b16 %v869, %v868
        %v902 = vunpack.c.l.b16 %v815
        %v903 = vunpack.c.l.b16 %v816
        %v904 = vunpack.c.l.b16 %v817
        %v905 = vunpack.c.l.b16 %v818
        %v906 = vunpack.c.l.b16 %v819
        %v907 = vunpack.c.l.b16 %v820
        %v908 = vunpack.c.l.b16 %v821
        %v909 = vunpack.c.l.b16 %v822
        %v910 = vunpack.c.l.b16 %v823
        %v911 = vunpack.c.l.b16 %v824
        %v912 = vunpack.c.l.b16 %v825
        %v913 = vunpack.c.l.b16 %v826
        %v914 = vunpack.c.l.b16 %v827
        %v915 = vunpack.c.l.b16 %v828
        %v916 = vunpack.c.l.b16 %v829
        %v917 = vunpack.c.l.b16 %v830
        %v918 = vpack.c.b16 %v903, %v902
        %v919 = vpack.c.b16 %v905, %v904
        %v920 = vpack.c.b16 %v907, %v906
        %v921 = vpack.c.b16 %v909, %v908
        %v922 = vpack.c.b16 %v911, %v910
        %v923 = vpack.c.b16 %v913, %v912
        %v924 = vpack.c.b16 %v915, %v914
        %v925 = vpack.c.b16 %v917, %v916
        %934 = vmatprep.subr.bf16.mxu0 0
        %935 = vmatpush1.bf16.msra.mxu0 %v918
        %936 = vmatprep.subr.bf16.mxu0 0
        %937 = vmatpush1.bf16.msra.mxu0 %v919
        %938 = vmatprep.subr.bf16.mxu0 0
        %939 = vmatpush1.bf16.msra.mxu0 %v920
        %940 = vmatprep.subr.bf16.mxu0 0
        %941 = vmatpush1.bf16.msra.mxu0 %v921
        %942 = vmatprep.subr.bf16.mxu0 0
        %943 = vmatpush1.bf16.msra.mxu0 %v922
        %944 = vmatprep.subr.bf16.mxu0 0
        %945 = vmatpush1.bf16.msra.mxu0 %v923
        %946 = vmatprep.subr.bf16.mxu0 0
        %947 = vmatpush1.bf16.msra.mxu0 %v924
        %948 = vmatprep.subr.bf16.mxu0 0
        %949 = vmatpush1.bf16.msra.mxu0 %v925
        %950 = vmatprep.subr.bf16.mxu0 0
        %951 = vmatpush1.bf16.msra.mxu0 0
        %952 = vmatprep.subr.bf16.mxu0 0
        %953 = vmatpush1.bf16.msra.mxu0 0
        %954 = vmatprep.subr.bf16.mxu0 0
        %955 = vmatpush1.bf16.msra.mxu0 0
        %956 = vmatprep.subr.bf16.mxu0 0
        %957 = vmatpush1.bf16.msra.mxu0 0
        %958 = vmatprep.subr.bf16.mxu0 0
        %959 = vmatpush1.bf16.msra.mxu0 0
        %960 = vmatprep.subr.bf16.mxu0 0
        %961 = vmatpush1.bf16.msra.mxu0 0
        %962 = vmatprep.subr.bf16.mxu0 0
        %963 = vmatpush1.bf16.msra.mxu0 0
        %964 = vmatprep.subr.bf16.mxu0 0
        %965 = vmatpush1.bf16.msra.mxu0 0
        %966 = vmatprep.mubr.bf16.mxu0 0
        %967 = vmatmul.mubr.bf16.gmra.mrb[0].mxu0 %v870
        %v968 = vpop.f32.mrb[0].mxu0
        %v969 = vadd.f32 %v836, %v968
        %v970 = vpop.f32.mrb[0].mxu0
        %v971 = vpop.f32.mrb[0].mxu0
        %v972 = vadd.f32 %v836, %v971
        %v973 = vpop.f32.mrb[0].mxu0
        %974 = vmatprep.mubr.bf16.mxu0 0
        %975 = vmatmul.mubr.bf16.gmra.mrb[0].mxu0 %v871
        %v976 = vpop.f32.mrb[0].mxu0
        %v977 = vadd.f32 %v836, %v976
        %v978 = vpop.f32.mrb[0].mxu0
        %v979 = vpop.f32.mrb[0].mxu0
        %v980 = vadd.f32 %v836, %v979
        %v981 = vpop.f32.mrb[0].mxu0
        %982 = vmatprep.mubr.bf16.mxu0 0
        %983 = vmatmul.mubr.bf16.gmra.mrb[0].mxu0 %v872
        %v984 = vpop.f32.mrb[0].mxu0
        %v985 = vadd.f32 %v836, %v984
        %v986 = vpop.f32.mrb[0].mxu0
        %v987 = vpop.f32.mrb[0].mxu0
        %v988 = vadd.f32 %v836, %v987
        %v989 = vpop.f32.mrb[0].mxu0
        %990 = vmatprep.mubr.bf16.mxu0 0
        %991 = vmatmul.mubr.bf16.gmra.mrb[0].mxu0 %v873
        %v992 = vpop.f32.mrb[0].mxu0
        %v993 = vadd.f32 %v836, %v992
        %v994 = vpop.f32.mrb[0].mxu0
        %v995 = vpop.f32.mrb[0].mxu0
        %v996 = vadd.f32 %v836, %v995
        %v997 = vpop.f32.mrb[0].mxu0
        %998 = vmatprep.mubr.bf16.mxu0 0
        %999 = vmatmul.mubr.bf16.gmra.mrb[0].mxu0 %v874
        %v1000 = vpop.f32.mrb[0].mxu0
        %v1001 = vadd.f32 %v836, %v1000
        %v1002 = vpop.f32.mrb[0].mxu0
        %v1003 = vpop.f32.mrb[0].mxu0
        %v1004 = vadd.f32 %v836, %v1003
        %v1005 = vpop.f32.mrb[0].mxu0
        %1006 = vmatprep.mubr.bf16.mxu0 0
        %1007 = vmatmul.mubr.bf16.gmra.mrb[0].mxu0 %v875
        %v1008 = vpop.f32.mrb[0].mxu0
        %v1009 = vadd.f32 %v836, %v1008
        %v1010 = vpop.f32.mrb[0].mxu0
        %v1011 = vpop.f32.mrb[0].mxu0
        %v1012 = vadd.f32 %v836, %v1011
        %v1013 = vpop.f32.mrb[0].mxu0
        %1014 = vmatprep.mubr.bf16.mxu0 0
        %1015 = vmatmul.mubr.bf16.gmra.mrb[0].mxu0 %v876
        %v1016 = vpop.f32.mrb[0].mxu0
        %v1017 = vadd.f32 %v836, %v1016
        %v1018 = vpop.f32.mrb[0].mxu0
        %v1019 = vpop.f32.mrb[0].mxu0
        %v1020 = vadd.f32 %v836, %v1019
        %v1021 = vpop.f32.mrb[0].mxu0
        %1022 = vmatprep.mubr.bf16.mxu0 0
        %1023 = vmatmul.mubr.bf16.gmra.mrb[0].mxu0 %v877
        %v1024 = vpop.f32.mrb[0].mxu0
        %v1025 = vadd.f32 %v836, %v1024
        %v1026 = vpop.f32.mrb[0].mxu0
        %v1027 = vpop.f32.mrb[0].mxu0
        %v1028 = vadd.f32 %v836, %v1027
        %v1029 = vpop.f32.mrb[0].mxu0
        %1030 = vdwg.mxu0
        %1031 = vst [vmem:[#allocation4] sm:$0xff] %v969
        %1032 = vst [vmem:[#allocation4 + $0x8] sm:$0xff] %v972
        %1033 = vst [vmem:[#allocation4 + $0x10] sm:$0xff] %v977
        %1034 = vst [vmem:[#allocation4 + $0x18] sm:$0xff] %v980
        %1035 = vst [vmem:[#allocation4 + $0x20] sm:$0xff] %v985
        %1036 = vst [vmem:[#allocation4 + $0x28] sm:$0xff] %v988
        %1037 = vst [vmem:[#allocation4 + $0x30] sm:$0xff] %v993
        %1038 = vst [vmem:[#allocation4 + $0x38] sm:$0xff] %v996
        %1039 = vst [vmem:[#allocation4 + $0x40] sm:$0xff] %v1001
        %1040 = vst [vmem:[#allocation4 + $0x48] sm:$0xff] %v1004
        %1041 = vst [vmem:[#allocation4 + $0x50] sm:$0xff] %v1009
        %1042 = vst [vmem:[#allocation4 + $0x58] sm:$0xff] %v1012
        %1043 = vst [vmem:[#allocation4 + $0x60] sm:$0xff] %v1017
        %1044 = vst [vmem:[#allocation4 + $0x68] sm:$0xff] %v1020
        %1045 = vst [vmem:[#allocation4 + $0x70] sm:$0xff] %v1025
        %1046 = vst [vmem:[#allocation4 + $0x78] sm:$0xff] %v1028
        %v1047 = vld [vmem:[%s533] sm:$0xf]
        %v1048 = vld [vmem:[#allocation16] sm:$0xff]
        %v1049 = vld [vmem:[#allocation16 + $0x8] sm:$0xff]
        %v1050 = vld [vmem:[#allocation16 + $0x10] sm:$0xff]
        %v1051 = vld [vmem:[#allocation16 + $0x18] sm:$0xff]
        %v1052 = vld [vmem:[#allocation16 + $0x20] sm:$0xff]
        %v1053 = vld [vmem:[#allocation16 + $0x28] sm:$0xff]
        %v1054 = vld [vmem:[#allocation16 + $0x30] sm:$0xff]
        %v1055 = vld [vmem:[#allocation16 + $0x38] sm:$0xff]
        %v1056 = vld [vmem:[%s11] sm:$0xf]
        %v1058 = vlaneseq
        %v1059 = vshrl.u32 %v1058, 7
        %v1060 = vsub.s32 0, %v1059
        %v1061 = vrot.slane %v1056, %v1060
        %v1062 = vlaneseq
        %v1063 = vshrl.u32 %v1062, 7
        %v1064 = vsub.s32 1, %v1063
        %v1065 = vrot.slane %v1056, %v1064
        %v1066 = vlaneseq
        %v1067 = vshrl.u32 %v1066, 7
        %v1068 = vsub.s32 2, %v1067
        %v1069 = vrot.slane %v1056, %v1068
        %v1070 = vlaneseq
        %v1071 = vshrl.u32 %v1070, 7
        %v1072 = vsub.s32 3, %v1071
        %v1073 = vrot.slane %v1056, %v1072
        %v1086 = vunpack.c.l.b16 %v1048
        %v1087 = vunpack.c.h.b16 %v1048
        %v1088 = vunpack.c.l.b16 %v1049
        %v1089 = vunpack.c.h.b16 %v1049
        %v1090 = vunpack.c.l.b16 %v1050
        %v1091 = vunpack.c.h.b16 %v1050
        %v1092 = vunpack.c.l.b16 %v1051
        %v1093 = vunpack.c.h.b16 %v1051
        %v1094 = vunpack.c.l.b16 %v1052
        %v1095 = vunpack.c.h.b16 %v1052
        %v1096 = vunpack.c.l.b16 %v1053
        %v1097 = vunpack.c.h.b16 %v1053
        %v1098 = vunpack.c.l.b16 %v1054
        %v1099 = vunpack.c.h.b16 %v1054
        %v1100 = vunpack.c.l.b16 %v1055
        %v1101 = vunpack.c.h.b16 %v1055
        %v1102 = vpack.c.b16 %v1090, %v1086
        %v1103 = vpack.c.b16 %v1091, %v1087
        %v1104 = vpack.c.b16 %v1092, %v1088
        %v1105 = vpack.c.b16 %v1093, %v1089
        %v1106 = vpack.c.b16 %v1098, %v1094
        %v1107 = vpack.c.b16 %v1099, %v1095
        %v1108 = vpack.c.b16 %v1100, %v1096
        %v1109 = vpack.c.b16 %v1101, %v1097
        %vm1118 = vcmask 261120
        %v1120 = vsel %vm1118, %v1047, 0
        %1122 = vmatprep.subr.bf16.mxu0 %v1103
        %1123 = vmatpush1.bf16.msra.mxu0 %v1102
        %1124 = vmatprep.subr.bf16.mxu0 %v1107
        %1125 = vmatpush1.bf16.msra.mxu0 %v1106
        %1126 = vmatprep.subr.bf16.mxu0 0
        %1127 = vmatpush1.bf16.msra.mxu0 0
        %1128 = vmatprep.subr.bf16.mxu0 0
        %1129 = vmatpush1.bf16.msra.mxu0 0
        %1130 = vmatprep.subr.bf16.mxu0 0
        %1131 = vmatpush1.bf16.msra.mxu0 0
        %1132 = vmatprep.subr.bf16.mxu0 0
        %1133 = vmatpush1.bf16.msra.mxu0 0
        %1134 = vmatprep.subr.bf16.mxu0 0
        %1135 = vmatpush1.bf16.msra.mxu0 0
        %1136 = vmatprep.subr.bf16.mxu0 0
        %1137 = vmatpush1.bf16.msra.mxu0 0
        %1138 = vmatprep.subr.bf16.mxu0 0
        %1139 = vmatpush1.bf16.msra.mxu0 0
        %1140 = vmatprep.subr.bf16.mxu0 0
        %1141 = vmatpush1.bf16.msra.mxu0 0
        %1142 = vmatprep.subr.bf16.mxu0 0
        %1143 = vmatpush1.bf16.msra.mxu0 0
        %1144 = vmatprep.subr.bf16.mxu0 0
        %1145 = vmatpush1.bf16.msra.mxu0 0
        %1146 = vmatprep.subr.bf16.mxu0 0
        %1147 = vmatpush1.bf16.msra.mxu0 0
        %1148 = vmatprep.subr.bf16.mxu0 0
        %1149 = vmatpush1.bf16.msra.mxu0 0
        %1150 = vmatprep.subr.bf16.mxu0 0
        %1151 = vmatpush1.bf16.msra.mxu0 0
        %1152 = vmatprep.subr.bf16.mxu0 0
        %1153 = vmatpush1.bf16.msra.mxu0 0
        %1154 = vmatprep.mubr.bf16.mxu0 0
        %1155 = vmatmul.mubr.bf16.gmra.mrb[0].mxu0 %v1120
        %v1156 = vpop.f32.mrb[0].mxu0
        %v1157 = vadd.f32 %v1061, %v1156
        %v1158 = vpop.f32.mrb[0].mxu0
        %v1159 = vadd.f32 %v1065, %v1158
        %v1160 = vpop.f32.mrb[0].mxu0
        %v1161 = vpop.f32.mrb[0].mxu0
        %1162 = vdwg.mxu0
        %1163 = vmatprep.subr.bf16.mxu0 %v1105
        %1164 = vmatpush1.bf16.msra.mxu0 %v1104
        %1165 = vmatprep.subr.bf16.mxu0 %v1109
        %1166 = vmatpush1.bf16.msra.mxu0 %v1108
        %1167 = vmatprep.subr.bf16.mxu0 0
        %1168 = vmatpush1.bf16.msra.mxu0 0
        %1169 = vmatprep.subr.bf16.mxu0 0
        %1170 = vmatpush1.bf16.msra.mxu0 0
        %1171 = vmatprep.subr.bf16.mxu0 0
        %1172 = vmatpush1.bf16.msra.mxu0 0
        %1173 = vmatprep.subr.bf16.mxu0 0
        %1174 = vmatpush1.bf16.msra.mxu0 0
        %1175 = vmatprep.subr.bf16.mxu0 0
        %1176 = vmatpush1.bf16.msra.mxu0 0
        %1177 = vmatprep.subr.bf16.mxu0 0
        %1178 = vmatpush1.bf16.msra.mxu0 0
        %1179 = vmatprep.subr.bf16.mxu0 0
        %1180 = vmatpush1.bf16.msra.mxu0 0
        %1181 = vmatprep.subr.bf16.mxu0 0
        %1182 = vmatpush1.bf16.msra.mxu0 0
        %1183 = vmatprep.subr.bf16.mxu0 0
        %1184 = vmatpush1.bf16.msra.mxu0 0
        %1185 = vmatprep.subr.bf16.mxu0 0
        %1186 = vmatpush1.bf16.msra.mxu0 0
        %1187 = vmatprep.subr.bf16.mxu0 0
        %1188 = vmatpush1.bf16.msra.mxu0 0
        %1189 = vmatprep.subr.bf16.mxu0 0
        %1190 = vmatpush1.bf16.msra.mxu0 0
        %1191 = vmatprep.subr.bf16.mxu0 0
        %1192 = vmatpush1.bf16.msra.mxu0 0
        %1193 = vmatprep.subr.bf16.mxu0 0
        %1194 = vmatpush1.bf16.msra.mxu0 0
        %1195 = vmatprep.mubr.bf16.mxu0 0
        %1196 = vmatmul.mubr.bf16.gmra.mrb[0].mxu0 %v1120
        %v1197 = vpop.f32.mrb[0].mxu0
        %v1198 = vadd.f32 %v1069, %v1197
        %v1199 = vpop.f32.mrb[0].mxu0
        %v1200 = vadd.f32 %v1073, %v1199
        %v1201 = vpop.f32.mrb[0].mxu0
        %v1202 = vpop.f32.mrb[0].mxu0
        %1203 = vdwg.mxu0
        %1204 = vst [vmem:[#allocation5] sm:$0xff] %v1157
        %1205 = vst [vmem:[#allocation5 + $0x8] sm:$0xff] %v1159
        %1206 = vst [vmem:[#allocation5 + $0x10] sm:$0xff] %v1198
        %1207 = vst [vmem:[#allocation5 + $0x18] sm:$0xff] %v1200
        %v1208 = vlaneseq
        %v1209 = vand.u32 %v1208, 127
        %vm1210 = vcmp.lt.s32.totalorder %v1209, 16
        loop: start=0, step=1, limit=8
        $region101: #{tpu_custom_call.1} parent=71 // loop_pre_header
          _
        $region102: #{tpu_custom_call.1} parent=71 // loop_header
          %s1212 = sphi 0, %s1216
          %p1213 = scmp.ge.s32.totalorder %s1212, 8
        $region103: #{tpu_custom_call.1} parent=71 // loop_header_branch
          %1215 = sbr.rel (%p1213) target = $region107
        $region104: #{tpu_custom_call.1} parent=71 // loop_body
          %v1217 = vld [vmem:[#allocation2] sm:$0x1]
          %v1218 = vld [vmem:[#allocation3] sm:$0x1]
          %v1219 = vpack.c.bf16 %v1217, %v1217
          %v1220 = vld [vmem:[#allocation15] sm:$0xff]
          %v1221 = vld [vmem:[#allocation15 + $0x8] sm:$0xff]
          %v1222 = vld [vmem:[#allocation15 + $0x10] sm:$0xff]
          %v1223 = vld [vmem:[#allocation15 + $0x18] sm:$0xff]
          %v1224 = vld [vmem:[#allocation15 + $0x20] sm:$0xff]
          %v1225 = vld [vmem:[#allocation15 + $0x28] sm:$0xff]
          %v1226 = vld [vmem:[#allocation15 + $0x30] sm:$0xff]
          %v1227 = vld [vmem:[#allocation15 + $0x38] sm:$0xff]
          %v1228 = vld [vmem:[#allocation15 + $0x40] sm:$0xff]
          %v1229 = vld [vmem:[#allocation15 + $0x48] sm:$0xff]
          %v1230 = vld [vmem:[#allocation15 + $0x50] sm:$0xff]
          %v1231 = vld [vmem:[#allocation15 + $0x58] sm:$0xff]
          %v1232 = vld [vmem:[#allocation15 + $0x60] sm:$0xff]
          %v1233 = vld [vmem:[#allocation15 + $0x68] sm:$0xff]
          %v1234 = vld [vmem:[#allocation15 + $0x70] sm:$0xff]
          %v1235 = vld [vmem:[#allocation15 + $0x78] sm:$0xff]
          %v1236 = vld [vmem:[#allocation15 + $0x80] sm:$0xff]
          %v1237 = vld [vmem:[#allocation15 + $0x88] sm:$0xff]
          %v1238 = vld [vmem:[#allocation15 + $0x90] sm:$0xff]
          %v1239 = vld [vmem:[#allocation15 + $0x98] sm:$0xff]
          %v1240 = vld [vmem:[#allocation15 + $0xa0] sm:$0xff]
          %v1241 = vld [vmem:[#allocation15 + $0xa8] sm:$0xff]
          %v1242 = vld [vmem:[#allocation15 + $0xb0] sm:$0xff]
          %v1243 = vld [vmem:[#allocation15 + $0xb8] sm:$0xff]
          %v1244 = vld [vmem:[#allocation15 + $0xc0] sm:$0xff]
          %v1245 = vld [vmem:[#allocation15 + $0xc8] sm:$0xff]
          %v1246 = vld [vmem:[#allocation15 + $0xd0] sm:$0xff]
          %v1247 = vld [vmem:[#allocation15 + $0xd8] sm:$0xff]
          %v1248 = vld [vmem:[#allocation15 + $0xe0] sm:$0xff]
          %v1249 = vld [vmem:[#allocation15 + $0xe8] sm:$0xff]
          %v1250 = vld [vmem:[#allocation15 + $0xf0] sm:$0xff]
          %v1251 = vld [vmem:[#allocation15 + $0xf8] sm:$0xff]
          %v1252 = vld [vmem:[#allocation15 + $0x100] sm:$0xff]
          %v1253 = vld [vmem:[#allocation15 + $0x108] sm:$0xff]
          %v1254 = vld [vmem:[#allocation15 + $0x110] sm:$0xff]
          %v1255 = vld [vmem:[#allocation15 + $0x118] sm:$0xff]
          %v1256 = vld [vmem:[#allocation15 + $0x120] sm:$0xff]
          %v1257 = vld [vmem:[#allocation15 + $0x128] sm:$0xff]
          %v1258 = vld [vmem:[#allocation15 + $0x130] sm:$0xff]
          %v1259 = vld [vmem:[#allocation15 + $0x138] sm:$0xff]
          %v1260 = vld [vmem:[#allocation15 + $0x140] sm:$0xff]
          %v1261 = vld [vmem:[#allocation15 + $0x148] sm:$0xff]
          %v1262 = vld [vmem:[#allocation15 + $0x150] sm:$0xff]
          %v1263 = vld [vmem:[#allocation15 + $0x158] sm:$0xff]
          %v1264 = vld [vmem:[#allocation15 + $0x160] sm:$0xff]
          %v1265 = vld [vmem:[#allocation15 + $0x168] sm:$0xff]
          %v1266 = vld [vmem:[#allocation15 + $0x170] sm:$0xff]
          %v1267 = vld [vmem:[#allocation15 + $0x178] sm:$0xff]
          %v1268 = vld [vmem:[%s9] sm:$0x3f]
          %v1317 = vunpack.c.l.b16 %v1220
          %v1318 = vunpack.c.h.b16 %v1220
          %v1319 = vunpack.c.l.b16 %v1221
          %v1320 = vunpack.c.h.b16 %v1221
          %v1321 = vunpack.c.l.b16 %v1222
          %v1322 = vunpack.c.h.b16 %v1222
          %v1323 = vunpack.c.l.b16 %v1223
          %v1324 = vunpack.c.h.b16 %v1223
          %v1325 = vunpack.c.l.b16 %v1224
          %v1326 = vunpack.c.h.b16 %v1224
          %v1327 = vunpack.c.l.b16 %v1225
          %v1328 = vunpack.c.h.b16 %v1225
          %v1329 = vunpack.c.l.b16 %v1226
          %v1330 = vunpack.c.h.b16 %v1226
          %v1331 = vunpack.c.l.b16 %v1227
          %v1332 = vunpack.c.h.b16 %v1227
          %v1333 = vunpack.c.l.b16 %v1228
          %v1334 = vunpack.c.h.b16 %v1228
          %v1335 = vunpack.c.l.b16 %v1229
          %v1336 = vunpack.c.h.b16 %v1229
          %v1337 = vunpack.c.l.b16 %v1230
          %v1338 = vunpack.c.h.b16 %v1230
          %v1339 = vunpack.c.l.b16 %v1231
          %v1340 = vunpack.c.h.b16 %v1231
          %v1341 = vunpack.c.l.b16 %v1232
          %v1342 = vunpack.c.h.b16 %v1232
          %v1343 = vunpack.c.l.b16 %v1233
          %v1344 = vunpack.c.h.b16 %v1233
          %v1345 = vunpack.c.l.b16 %v1234
          %v1346 = vunpack.c.h.b16 %v1234
          %v1347 = vunpack.c.l.b16 %v1235
          %v1348 = vunpack.c.h.b16 %v1235
          %v1349 = vunpack.c.l.b16 %v1236
          %v1350 = vunpack.c.h.b16 %v1236
          %v1351 = vunpack.c.l.b16 %v1237
          %v1352 = vunpack.c.h.b16 %v1237
          %v1353 = vunpack.c.l.b16 %v1238
          %v1354 = vunpack.c.h.b16 %v1238
          %v1355 = vunpack.c.l.b16 %v1239
          %v1356 = vunpack.c.h.b16 %v1239
          %v1357 = vunpack.c.l.b16 %v1240
          %v1358 = vunpack.c.h.b16 %v1240
          %v1359 = vunpack.c.l.b16 %v1241
          %v1360 = vunpack.c.h.b16 %v1241
          %v1361 = vunpack.c.l.b16 %v1242
          %v1362 = vunpack.c.h.b16 %v1242
          %v1363 = vunpack.c.l.b16 %v1243
          %v1364 = vunpack.c.h.b16 %v1243
          %v1365 = vunpack.c.l.b16 %v1244
          %v1366 = vunpack.c.h.b16 %v1244
          %v1367 = vunpack.c.l.b16 %v1245
          %v1368 = vunpack.c.h.b16 %v1245
          %v1369 = vunpack.c.l.b16 %v1246
          %v1370 = vunpack.c.h.b16 %v1246
          %v1371 = vunpack.c.l.b16 %v1247
          %v1372 = vunpack.c.h.b16 %v1247
          %v1373 = vunpack.c.l.b16 %v1248
          %v1374 = vunpack.c.h.b16 %v1248
          %v1375 = vunpack.c.l.b16 %v1249
          %v1376 = vunpack.c.h.b16 %v1249
          %v1377 = vunpack.c.l.b16 %v1250
          %v1378 = vunpack.c.h.b16 %v1250
          %v1379 = vunpack.c.l.b16 %v1251
          %v1380 = vunpack.c.h.b16 %v1251
          %v1381 = vunpack.c.l.b16 %v1252
          %v1382 = vunpack.c.h.b16 %v1252
          %v1383 = vunpack.c.l.b16 %v1253
          %v1384 = vunpack.c.h.b16 %v1253
          %v1385 = vunpack.c.l.b16 %v1254
          %v1386 = vunpack.c.h.b16 %v1254
          %v1387 = vunpack.c.l.b16 %v1255
          %v1388 = vunpack.c.h.b16 %v1255
          %v1389 = vunpack.c.l.b16 %v1256
          %v1390 = vunpack.c.h.b16 %v1256
          %v1391 = vunpack.c.l.b16 %v1257
          %v1392 = vunpack.c.h.b16 %v1257
          %v1393 = vunpack.c.l.b16 %v1258
          %v1394 = vunpack.c.h.b16 %v1258
          %v1395 = vunpack.c.l.b16 %v1259
          %v1396 = vunpack.c.h.b16 %v1259
          %v1397 = vunpack.c.l.b16 %v1260
          %v1398 = vunpack.c.h.b16 %v1260
          %v1399 = vunpack.c.l.b16 %v1261
          %v1400 = vunpack.c.h.b16 %v1261
          %v1401 = vunpack.c.l.b16 %v1262
          %v1402 = vunpack.c.h.b16 %v1262
          %v1403 = vunpack.c.l.b16 %v1263
          %v1404 = vunpack.c.h.b16 %v1263
          %v1405 = vunpack.c.l.b16 %v1264
          %v1406 = vunpack.c.h.b16 %v1264
          %v1407 = vunpack.c.l.b16 %v1265
          %v1408 = vunpack.c.h.b16 %v1265
          %v1409 = vunpack.c.l.b16 %v1266
          %v1410 = vunpack.c.h.b16 %v1266
          %v1411 = vunpack.c.l.b16 %v1267
          %v1412 = vunpack.c.h.b16 %v1267
          %v1413 = vpack.c.b16 %v1323, %v1317
          %v1414 = vpack.c.b16 %v1324, %v1318
          %v1415 = vpack.c.b16 %v1325, %v1319
          %v1416 = vpack.c.b16 %v1326, %v1320
          %v1417 = vpack.c.b16 %v1327, %v1321
          %v1418 = vpack.c.b16 %v1328, %v1322
          %v1419 = vpack.c.b16 %v1335, %v1329
          %v1420 = vpack.c.b16 %v1336, %v1330
          %v1421 = vpack.c.b16 %v1337, %v1331
          %v1422 = vpack.c.b16 %v1338, %v1332
          %v1423 = vpack.c.b16 %v1339, %v1333
          %v1424 = vpack.c.b16 %v1340, %v1334
          %v1425 = vpack.c.b16 %v1347, %v1341
          %v1426 = vpack.c.b16 %v1348, %v1342
          %v1427 = vpack.c.b16 %v1349, %v1343
          %v1428 = vpack.c.b16 %v1350, %v1344
          %v1429 = vpack.c.b16 %v1351, %v1345
          %v1430 = vpack.c.b16 %v1352, %v1346
          %v1431 = vpack.c.b16 %v1359, %v1353
          %v1432 = vpack.c.b16 %v1360, %v1354
          %v1433 = vpack.c.b16 %v1361, %v1355
          %v1434 = vpack.c.b16 %v1362, %v1356
          %v1435 = vpack.c.b16 %v1363, %v1357
          %v1436 = vpack.c.b16 %v1364, %v1358
          %v1437 = vpack.c.b16 %v1371, %v1365
          %v1438 = vpack.c.b16 %v1372, %v1366
          %v1439 = vpack.c.b16 %v1373, %v1367
          %v1440 = vpack.c.b16 %v1374, %v1368
          %v1441 = vpack.c.b16 %v1375, %v1369
          %v1442 = vpack.c.b16 %v1376, %v1370
          %v1443 = vpack.c.b16 %v1383, %v1377
          %v1444 = vpack.c.b16 %v1384, %v1378
          %v1445 = vpack.c.b16 %v1385, %v1379
          %v1446 = vpack.c.b16 %v1386, %v1380
          %v1447 = vpack.c.b16 %v1387, %v1381
          %v1448 = vpack.c.b16 %v1388, %v1382
          %v1449 = vpack.c.b16 %v1395, %v1389
          %v1450 = vpack.c.b16 %v1396, %v1390
          %v1451 = vpack.c.b16 %v1397, %v1391
          %v1452 = vpack.c.b16 %v1398, %v1392
          %v1453 = vpack.c.b16 %v1399, %v1393
          %v1454 = vpack.c.b16 %v1400, %v1394
          %v1455 = vpack.c.b16 %v1407, %v1401
          %v1456 = vpack.c.b16 %v1408, %v1402
          %v1457 = vpack.c.b16 %v1409, %v1403
          %v1458 = vpack.c.b16 %v1410, %v1404
          %v1459 = vpack.c.b16 %v1411, %v1405
          %v1460 = vpack.c.b16 %v1412, %v1406
          %v1510 = vlaneseq
          %v1511 = vshrl.u32 %v1510, 7
          %v1512 = vsub.s32 0, %v1511
          %v1513 = vrot.slane %v1268, %v1512
          %v1514 = vlaneseq
          %v1515 = vshrl.u32 %v1514, 7
          %v1516 = vsub.s32 1, %v1515
          %v1517 = vrot.slane %v1268, %v1516
          %v1518 = vlaneseq
          %v1519 = vshrl.u32 %v1518, 7
          %v1520 = vsub.s32 2, %v1519
          %v1521 = vrot.slane %v1268, %v1520
          %v1522 = vlaneseq
          %v1523 = vshrl.u32 %v1522, 7
          %v1524 = vsub.s32 3, %v1523
          %v1525 = vrot.slane %v1268, %v1524
          %v1526 = vlaneseq
          %v1527 = vshrl.u32 %v1526, 7
          %v1528 = vsub.s32 4, %v1527
          %v1529 = vrot.slane %v1268, %v1528
          %v1530 = vlaneseq
          %v1531 = vshrl.u32 %v1530, 7
          %v1532 = vsub.s32 5, %v1531
          %v1533 = vrot.slane %v1268, %v1532
          %1540 = vmatprep.subr.bf16.mxu0 %v1414
          %1541 = vmatpush1.bf16.msra.mxu0 %v1413
          %1542 = vmatprep.subr.bf16.mxu0 %v1420
          %1543 = vmatpush1.bf16.msra.mxu0 %v1419
          %1544 = vmatprep.subr.bf16.mxu0 %v1426
          %1545 = vmatpush1.bf16.msra.mxu0 %v1425
          %1546 = vmatprep.subr.bf16.mxu0 %v1432
          %1547 = vmatpush1.bf16.msra.mxu0 %v1431
          %1548 = vmatprep.subr.bf16.mxu0 %v1438
          %1549 = vmatpush1.bf16.msra.mxu0 %v1437
          %1550 = vmatprep.subr.bf16.mxu0 %v1444
          %1551 = vmatpush1.bf16.msra.mxu0 %v1443
          %1552 = vmatprep.subr.bf16.mxu0 %v1450
          %1553 = vmatpush1.bf16.msra.mxu0 %v1449
          %1554 = vmatprep.subr.bf16.mxu0 %v1456
          %1555 = vmatpush1.bf16.msra.mxu0 %v1455
          %1556 = vmatprep.subr.bf16.mxu0 0
          %1557 = vmatpush1.bf16.msra.mxu0 0
          %1558 = vmatprep.subr.bf16.mxu0 0
          %1559 = vmatpush1.bf16.msra.mxu0 0
          %1560 = vmatprep.subr.bf16.mxu0 0
          %1561 = vmatpush1.bf16.msra.mxu0 0
          %1562 = vmatprep.subr.bf16.mxu0 0
          %1563 = vmatpush1.bf16.msra.mxu0 0
          %1564 = vmatprep.subr.bf16.mxu0 0
          %1565 = vmatpush1.bf16.msra.mxu0 0
          %1566 = vmatprep.subr.bf16.mxu0 0
          %1567 = vmatpush1.bf16.msra.mxu0 0
          %1568 = vmatprep.subr.bf16.mxu0 0
          %1569 = vmatpush1.bf16.msra.mxu0 0
          %1570 = vmatprep.subr.bf16.mxu0 0
          %1571 = vmatpush1.bf16.msra.mxu0 0
          %1572 = vmatprep.mubr.bf16.mxu0 0
          %1573 = vmatmul.mubr.bf16.gmra.mrb[0].mxu0 %v1219
          %v1574 = vpop.f32.mrb[0].mxu0
          %v1575 = vadd.f32 %v1513, %v1574
          %v1576 = vpop.f32.mrb[0].mxu0
          %v1577 = vadd.f32 %v1517, %v1576
          %v1578 = vpop.f32.mrb[0].mxu0
          %v1579 = vpop.f32.mrb[0].mxu0
          %1580 = vdwg.mxu0
          %1581 = vmatprep.subr.bf16.mxu0 %v1416
          %1582 = vmatpush1.bf16.msra.mxu0 %v1415
          %1583 = vmatprep.subr.bf16.mxu0 %v1422
          %1584 = vmatpush1.bf16.msra.mxu0 %v1421
          %1585 = vmatprep.subr.bf16.mxu0 %v1428
          %1586 = vmatpush1.bf16.msra.mxu0 %v1427
          %1587 = vmatprep.subr.bf16.mxu0 %v1434
          %1588 = vmatpush1.bf16.msra.mxu0 %v1433
          %1589 = vmatprep.subr.bf16.mxu0 %v1440
          %1590 = vmatpush1.bf16.msra.mxu0 %v1439
          %1591 = vmatprep.subr.bf16.mxu0 %v1446
          %1592 = vmatpush1.bf16.msra.mxu0 %v1445
          %1593 = vmatprep.subr.bf16.mxu0 %v1452
          %1594 = vmatpush1.bf16.msra.mxu0 %v1451
          %1595 = vmatprep.subr.bf16.mxu0 %v1458
          %1596 = vmatpush1.bf16.msra.mxu0 %v1457
          %1597 = vmatprep.subr.bf16.mxu0 0
          %1598 = vmatpush1.bf16.msra.mxu0 0
          %1599 = vmatprep.subr.bf16.mxu0 0
          %1600 = vmatpush1.bf16.msra.mxu0 0
          %1601 = vmatprep.subr.bf16.mxu0 0
          %1602 = vmatpush1.bf16.msra.mxu0 0
          %1603 = vmatprep.subr.bf16.mxu0 0
          %1604 = vmatpush1.bf16.msra.mxu0 0
          %1605 = vmatprep.subr.bf16.mxu0 0
          %1606 = vmatpush1.bf16.msra.mxu0 0
          %1607 = vmatprep.subr.bf16.mxu0 0
          %1608 = vmatpush1.bf16.msra.mxu0 0
          %1609 = vmatprep.subr.bf16.mxu0 0
          %1610 = vmatpush1.bf16.msra.mxu0 0
          %1611 = vmatprep.subr.bf16.mxu0 0
          %1612 = vmatpush1.bf16.msra.mxu0 0
          %1613 = vmatprep.mubr.bf16.mxu0 0
          %1614 = vmatmul.mubr.bf16.gmra.mrb[0].mxu0 %v1219
          %v1615 = vpop.f32.mrb[0].mxu0
          %v1616 = vadd.f32 %v1521, %v1615
          %v1617 = vpop.f32.mrb[0].mxu0
          %v1618 = vadd.f32 %v1525, %v1617
          %v1619 = vpop.f32.mrb[0].mxu0
          %v1620 = vpop.f32.mrb[0].mxu0
          %1621 = vdwg.mxu0
          %1622 = vmatprep.subr.bf16.mxu0 %v1418
          %1623 = vmatpush1.bf16.msra.mxu0 %v1417
          %1624 = vmatprep.subr.bf16.mxu0 %v1424
          %1625 = vmatpush1.bf16.msra.mxu0 %v1423
          %1626 = vmatprep.subr.bf16.mxu0 %v1430
          %1627 = vmatpush1.bf16.msra.mxu0 %v1429
          %1628 = vmatprep.subr.bf16.mxu0 %v1436
          %1629 = vmatpush1.bf16.msra.mxu0 %v1435
          %1630 = vmatprep.subr.bf16.mxu0 %v1442
          %1631 = vmatpush1.bf16.msra.mxu0 %v1441
          %1632 = vmatprep.subr.bf16.mxu0 %v1448
          %1633 = vmatpush1.bf16.msra.mxu0 %v1447
          %1634 = vmatprep.subr.bf16.mxu0 %v1454
          %1635 = vmatpush1.bf16.msra.mxu0 %v1453
          %1636 = vmatprep.subr.bf16.mxu0 %v1460
          %1637 = vmatpush1.bf16.msra.mxu0 %v1459
          %1638 = vmatprep.subr.bf16.mxu0 0
          %1639 = vmatpush1.bf16.msra.mxu0 0
          %1640 = vmatprep.subr.bf16.mxu0 0
          %1641 = vmatpush1.bf16.msra.mxu0 0
          %1642 = vmatprep.subr.bf16.mxu0 0
          %1643 = vmatpush1.bf16.msra.mxu0 0
          %1644 = vmatprep.subr.bf16.mxu0 0
          %1645 = vmatpush1.bf16.msra.mxu0 0
          %1646 = vmatprep.subr.bf16.mxu0 0
          %1647 = vmatpush1.bf16.msra.mxu0 0
          %1648 = vmatprep.subr.bf16.mxu0 0
          %1649 = vmatpush1.bf16.msra.mxu0 0
          %1650 = vmatprep.subr.bf16.mxu0 0
          %1651 = vmatpush1.bf16.msra.mxu0 0
          %1652 = vmatprep.subr.bf16.mxu0 0
          %1653 = vmatpush1.bf16.msra.mxu0 0
          %1654 = vmatprep.mubr.bf16.mxu0 0
          %1655 = vmatmul.mubr.bf16.gmra.mrb[0].mxu0 %v1219
          %v1656 = vpop.f32.mrb[0].mxu0
          %v1657 = vadd.f32 %v1529, %v1656
          %v1658 = vpop.f32.mrb[0].mxu0
          %v1659 = vadd.f32 %v1533, %v1658
          %v1660 = vpop.f32.mrb[0].mxu0
          %v1661 = vpop.f32.mrb[0].mxu0
          %1662 = vdwg.mxu0
          %v1663 = vxor.u32 %v1577, 2147483648
          %v1664 = vmul.f32 %v1663, 1.442695
          %v1665 = vpow.pop %v1664
          %v1666 = vadd.f32 %v1665, 1.0
          %v1667 = vrcp.pop %v1666
          %v1668 = vmul.f32 1.0, %v1667
          %v1669 = vld [vmem:[#allocation4] sm:$0xff]
          %v1670 = vld [vmem:[#allocation4 + $0x8] sm:$0xff]
          %v1671 = vld [vmem:[#allocation4 + $0x10] sm:$0xff]
          %v1672 = vld [vmem:[#allocation4 + $0x18] sm:$0xff]
          %v1673 = vld [vmem:[#allocation4 + $0x20] sm:$0xff]
          %v1674 = vld [vmem:[#allocation4 + $0x28] sm:$0xff]
          %v1675 = vld [vmem:[#allocation4 + $0x30] sm:$0xff]
          %v1676 = vld [vmem:[#allocation4 + $0x38] sm:$0xff]
          %v1677 = vld [vmem:[#allocation4 + $0x40] sm:$0xff]
          %v1678 = vld [vmem:[#allocation4 + $0x48] sm:$0xff]
          %v1679 = vld [vmem:[#allocation4 + $0x50] sm:$0xff]
          %v1680 = vld [vmem:[#allocation4 + $0x58] sm:$0xff]
          %v1681 = vld [vmem:[#allocation4 + $0x60] sm:$0xff]
          %v1682 = vld [vmem:[#allocation4 + $0x68] sm:$0xff]
          %v1683 = vld [vmem:[#allocation4 + $0x70] sm:$0xff]
          %v1684 = vld [vmem:[#allocation4 + $0x78] sm:$0xff]
          %v1685 = vlaneseq
          %v1686 = vshrl.u32 %v1685, 7
          %v1687 = vsub.s32 0, %v1686
          %v1688 = vrot.slane %v1575, %v1687
          %v1689 = vadd.f32 %v1669, %v1688
          %v1690 = vadd.f32 %v1670, %v1688
          %v1691 = vadd.f32 %v1671, %v1688
          %v1692 = vadd.f32 %v1672, %v1688
          %v1693 = vadd.f32 %v1673, %v1688
          %v1694 = vadd.f32 %v1674, %v1688
          %v1695 = vadd.f32 %v1675, %v1688
          %v1696 = vadd.f32 %v1676, %v1688
          %v1697 = vadd.f32 %v1677, %v1688
          %v1698 = vadd.f32 %v1678, %v1688
          %v1699 = vadd.f32 %v1679, %v1688
          %v1700 = vadd.f32 %v1680, %v1688
          %v1701 = vadd.f32 %v1681, %v1688
          %v1702 = vadd.f32 %v1682, %v1688
          %v1703 = vadd.f32 %v1683, %v1688
          %v1704 = vadd.f32 %v1684, %v1688
          %v1705 = vmax.f32 %v1689, 0.0
          %v1706 = vmax.f32 %v1690, 0.0
          %v1707 = vmax.f32 %v1691, 0.0
          %v1708 = vmax.f32 %v1692, 0.0
          %v1709 = vmax.f32 %v1693, 0.0
          %v1710 = vmax.f32 %v1694, 0.0
          %v1711 = vmax.f32 %v1695, 0.0
          %v1712 = vmax.f32 %v1696, 0.0
          %v1713 = vmax.f32 %v1697, 0.0
          %v1714 = vmax.f32 %v1698, 0.0
          %v1715 = vmax.f32 %v1699, 0.0
          %v1716 = vmax.f32 %v1700, 0.0
          %v1717 = vmax.f32 %v1701, 0.0
          %v1718 = vmax.f32 %v1702, 0.0
          %v1719 = vmax.f32 %v1703, 0.0
          %v1720 = vmax.f32 %v1704, 0.0
          %v1721 = vld [vmem:[%s6] sm:$0x1]
          %v1723 = vlaneseq
          %v1724 = vshrl.u32 %v1723, 7
          %v1725 = vsub.s32 0, %v1724
          %v1726 = vrot.slane %v1721, %v1725
          %v1728 = vmul.f32 %v1705, %v1726
          %v1729 = vmul.f32 %v1706, %v1726
          %v1730 = vmul.f32 %v1707, %v1726
          %v1731 = vmul.f32 %v1708, %v1726
          %v1732 = vmul.f32 %v1709, %v1726
          %v1733 = vmul.f32 %v1710, %v1726
          %v1734 = vmul.f32 %v1711, %v1726
          %v1735 = vmul.f32 %v1712, %v1726
          %v1736 = vmul.f32 %v1713, %v1726
          %v1737 = vmul.f32 %v1714, %v1726
          %v1738 = vmul.f32 %v1715, %v1726
          %v1739 = vmul.f32 %v1716, %v1726
          %v1740 = vmul.f32 %v1717, %v1726
          %v1741 = vmul.f32 %v1718, %v1726
          %v1742 = vmul.f32 %v1719, %v1726
          %v1743 = vmul.f32 %v1720, %v1726
          %1744 = vadd.xlane.f32.xlu0 %v1728
          %v1745 = vpop.xlane.xlu0 %1744
          %1746 = vadd.xlane.f32.xlu0 %v1729
          %v1747 = vpop.xlane.xlu0 %1746
          %1748 = vadd.xlane.f32.xlu0 %v1730
          %v1749 = vpop.xlane.xlu0 %1748
          %1750 = vadd.xlane.f32.xlu0 %v1731
          %v1751 = vpop.xlane.xlu0 %1750
          %1752 = vadd.xlane.f32.xlu0 %v1732
          %v1753 = vpop.xlane.xlu0 %1752
          %1754 = vadd.xlane.f32.xlu0 %v1733
          %v1755 = vpop.xlane.xlu0 %1754
          %1756 = vadd.xlane.f32.xlu0 %v1734
          %v1757 = vpop.xlane.xlu0 %1756
          %1758 = vadd.xlane.f32.xlu0 %v1735
          %v1759 = vpop.xlane.xlu0 %1758
          %1760 = vadd.xlane.f32.xlu0 %v1736
          %v1761 = vpop.xlane.xlu0 %1760
          %1762 = vadd.xlane.f32.xlu0 %v1737
          %v1763 = vpop.xlane.xlu0 %1762
          %1764 = vadd.xlane.f32.xlu0 %v1738
          %v1765 = vpop.xlane.xlu0 %1764
          %1766 = vadd.xlane.f32.xlu0 %v1739
          %v1767 = vpop.xlane.xlu0 %1766
          %1768 = vadd.xlane.f32.xlu0 %v1740
          %v1769 = vpop.xlane.xlu0 %1768
          %1770 = vadd.xlane.f32.xlu0 %v1741
          %v1771 = vpop.xlane.xlu0 %1770
          %1772 = vadd.xlane.f32.xlu0 %v1742
          %v1773 = vpop.xlane.xlu0 %1772
          %1774 = vadd.xlane.f32.xlu0 %v1743
          %v1775 = vpop.xlane.xlu0 %1774
          %v1776 = vld [vmem:[#allocation6] sm:$0x1]
          %1778 = vset.pattern.permute.xlu0 0
          %1779 = vperm.xlu0 %1778, %v1776
          %v1780 = vpop.permute.xlu0 %1779
          %v1782 = vlaneseq
          %v1783 = vshrl.u32 %v1782, 7
          %v1784 = vsub.s32 0, %v1783
          %v1785 = vrot.slane %v1780, %v1784
          %v1786 = vadd.f32 %v1745, %v1785
          %v1787 = vadd.f32 %v1747, %v1785
          %v1788 = vadd.f32 %v1749, %v1785
          %v1789 = vadd.f32 %v1751, %v1785
          %v1790 = vadd.f32 %v1753, %v1785
          %v1791 = vadd.f32 %v1755, %v1785
          %v1792 = vadd.f32 %v1757, %v1785
          %v1793 = vadd.f32 %v1759, %v1785
          %v1794 = vadd.f32 %v1761, %v1785
          %v1795 = vadd.f32 %v1763, %v1785
          %v1796 = vadd.f32 %v1765, %v1785
          %v1797 = vadd.f32 %v1767, %v1785
          %v1798 = vadd.f32 %v1769, %v1785
          %v1799 = vadd.f32 %v1771, %v1785
          %v1800 = vadd.f32 %v1773, %v1785
          %v1801 = vadd.f32 %v1775, %v1785
          %v1818 = vlaneseq
          %v1819 = vshrl.u32 %v1818, 7
          %v1820 = vsub.s32 %v1209, %v1819
          %v1821 = vrot.slane %v1786, %v1820
          %v1822 = vadd.s32 %v1209, 4294967288
          %v1823 = vlaneseq
          %v1824 = vshrl.u32 %v1823, 7
          %v1825 = vsub.s32 %v1822, %v1824
          %v1826 = vrot.slane %v1787, %v1825
          %vm1827 = vcmask 130112
          %v1828 = vsel %vm1827, %v1826, %v1821
          %v1829 = vadd.s32 %v1209, 4294967280
          %v1830 = vlaneseq
          %v1831 = vshrl.u32 %v1830, 7
          %v1832 = vsub.s32 %v1829, %v1831
          %v1833 = vrot.slane %v1788, %v1832
          %vm1834 = vcmask 195712
          %v1835 = vsel %vm1834, %v1833, %v1828
          %v1836 = vadd.s32 %v1209, 4294967272
          %v1837 = vlaneseq
          %v1838 = vshrl.u32 %v1837, 7
          %v1839 = vsub.s32 %v1836, %v1838
          %v1840 = vrot.slane %v1789, %v1839
          %vm1841 = vcmask 261312
          %v1842 = vsel %vm1841, %v1840, %v1835
          %v1843 = vadd.s32 %v1209, 4294967264
          %v1844 = vlaneseq
          %v1845 = vshrl.u32 %v1844, 7
          %v1846 = vsub.s32 %v1843, %v1845
          %v1847 = vrot.slane %v1790, %v1846
          %vm1848 = vcmask 326912
          %v1849 = vsel %vm1848, %v1847, %v1842
          %v1850 = vadd.s32 %v1209, 4294967256
          %v1851 = vlaneseq
          %v1852 = vshrl.u32 %v1851, 7
          %v1853 = vsub.s32 %v1850, %v1852
          %v1854 = vrot.slane %v1791, %v1853
          %vm1855 = vcmask 392512
          %v1856 = vsel %vm1855, %v1854, %v1849
          %v1857 = vadd.s32 %v1209, 4294967248
          %v1858 = vlaneseq
          %v1859 = vshrl.u32 %v1858, 7
          %v1860 = vsub.s32 %v1857, %v1859
          %v1861 = vrot.slane %v1792, %v1860
          %vm1862 = vcmask 458112
          %v1863 = vsel %vm1862, %v1861, %v1856
          %v1864 = vadd.s32 %v1209, 4294967240
          %v1865 = vlaneseq
          %v1866 = vshrl.u32 %v1865, 7
          %v1867 = vsub.s32 %v1864, %v1866
          %v1868 = vrot.slane %v1793, %v1867
          %vm1869 = vcmask 523712
          %v1870 = vsel %vm1869, %v1868, %v1863
          %v1871 = vadd.s32 %v1209, 4294967232
          %v1872 = vlaneseq
          %v1873 = vshrl.u32 %v1872, 7
          %v1874 = vsub.s32 %v1871, %v1873
          %v1875 = vrot.slane %v1794, %v1874
          %vm1876 = vcmask 589312
          %v1877 = vsel %vm1876, %v1875, %v1870
          %v1878 = vadd.s32 %v1209, 4294967224
          %v1879 = vlaneseq
          %v1880 = vshrl.u32 %v1879, 7
          %v1881 = vsub.s32 %v1878, %v1880
          %v1882 = vrot.slane %v1795, %v1881
          %vm1883 = vcmask 654912
          %v1884 = vsel %vm1883, %v1882, %v1877
          %v1885 = vadd.s32 %v1209, 4294967216
          %v1886 = vlaneseq
          %v1887 = vshrl.u32 %v1886, 7
          %v1888 = vsub.s32 %v1885, %v1887
          %v1889 = vrot.slane %v1796, %v1888
          %vm1890 = vcmask 720512
          %v1891 = vsel %vm1890, %v1889, %v1884
          %v1892 = vadd.s32 %v1209, 4294967208
          %v1893 = vlaneseq
          %v1894 = vshrl.u32 %v1893, 7
          %v1895 = vsub.s32 %v1892, %v1894
          %v1896 = vrot.slane %v1797, %v1895
          %vm1897 = vcmask 786112
          %v1898 = vsel %vm1897, %v1896, %v1891
          %v1899 = vadd.s32 %v1209, 4294967200
          %v1900 = vlaneseq
          %v1901 = vshrl.u32 %v1900, 7
          %v1902 = vsub.s32 %v1899, %v1901
          %v1903 = vrot.slane %v1798, %v1902
          %vm1904 = vcmask 851712
          %v1905 = vsel %vm1904, %v1903, %v1898
          %v1906 = vadd.s32 %v1209, 4294967192
          %v1907 = vlaneseq
          %v1908 = vshrl.u32 %v1907, 7
          %v1909 = vsub.s32 %v1906, %v1908
          %v1910 = vrot.slane %v1799, %v1909
          %vm1911 = vcmask 917312
          %v1912 = vsel %vm1911, %v1910, %v1905
          %v1913 = vadd.s32 %v1209, 4294967184
          %v1914 = vlaneseq
          %v1915 = vshrl.u32 %v1914, 7
          %v1916 = vsub.s32 %v1913, %v1915
          %v1917 = vrot.slane %v1800, %v1916
          %vm1918 = vcmask 982912
          %v1919 = vsel %vm1918, %v1917, %v1912
          %v1920 = vadd.s32 %v1209, 4294967176
          %v1921 = vlaneseq
          %v1922 = vshrl.u32 %v1921, 7
          %v1923 = vsub.s32 %v1920, %v1922
          %v1924 = vrot.slane %v1801, %v1923
          %vm1925 = vcmask 1048512
          %v1926 = vsel %vm1925, %v1924, %v1919
          %v1928 = vsel %vm1210, %v1926, -1e+30
          %vm1929 = vcmask 1040384
          %v1930 = vsel %vm1929, %v1928, -inf
          %1931 = vmax.xlane.f32.xlu0 %v1930
          %v1932 = vpop.xlane.xlu0 %1931
          %v1933 = vsub.f32 %v1928, %v1932
          %v1934 = vmul.f32 %v1933, 1.442695
          %v1935 = vpow.pop %v1934
          %v1936 = vsel %vm1929, %v1935, 0.0
          %1937 = vadd.xlane.f32.xlu0 %v1936
          %v1938 = vpop.xlane.xlu0 %1937
          %v1939 = vrcp.pop %v1938
          %v1940 = vmul.f32 %v1935, %v1939
          %v1941 = vpack.c.bf16 %v1940, %v1940
          %v1942 = vld [vmem:[%s524] sm:$0xf]
          %v1943 = vld [vmem:[%s524 + $0x4] sm:$0xf]
          %v1944 = vld [vmem:[%s524 + $0x8] sm:$0xf]
          %v1945 = vld [vmem:[%s524 + $0xc] sm:$0xf]
          %v1946 = vld [vmem:[%s524 + $0x10] sm:$0xf]
          %v1947 = vld [vmem:[%s524 + $0x14] sm:$0xf]
          %v1948 = vld [vmem:[%s524 + $0x18] sm:$0xf]
          %v1949 = vld [vmem:[%s524 + $0x1c] sm:$0xf]
          %v1950 = vld [vmem:[%s524 + $0x20] sm:$0xf]
          %v1951 = vld [vmem:[%s524 + $0x24] sm:$0xf]
          %v1952 = vld [vmem:[%s524 + $0x28] sm:$0xf]
          %v1953 = vld [vmem:[%s524 + $0x2c] sm:$0xf]
          %v1954 = vld [vmem:[%s524 + $0x30] sm:$0xf]
          %v1955 = vld [vmem:[%s524 + $0x34] sm:$0xf]
          %v1956 = vld [vmem:[%s524 + $0x38] sm:$0xf]
          %v1957 = vld [vmem:[%s524 + $0x3c] sm:$0xf]
          %v1974 = vunpack.c.l.b16 %v1942
          %v1975 = vunpack.c.l.b16 %v1943
          %v1976 = vunpack.c.l.b16 %v1944
          %v1977 = vunpack.c.l.b16 %v1945
          %v1978 = vunpack.c.l.b16 %v1946
          %v1979 = vunpack.c.l.b16 %v1947
          %v1980 = vunpack.c.l.b16 %v1948
          %v1981 = vunpack.c.l.b16 %v1949
          %v1982 = vunpack.c.l.b16 %v1950
          %v1983 = vunpack.c.l.b16 %v1951
          %v1984 = vunpack.c.l.b16 %v1952
          %v1985 = vunpack.c.l.b16 %v1953
          %v1986 = vunpack.c.l.b16 %v1954
          %v1987 = vunpack.c.l.b16 %v1955
          %v1988 = vunpack.c.l.b16 %v1956
          %v1989 = vunpack.c.l.b16 %v1957
          %v1990 = vpack.c.b16 %v1975, %v1974
          %v1991 = vpack.c.b16 %v1977, %v1976
          %v1992 = vpack.c.b16 %v1979, %v1978
          %v1993 = vpack.c.b16 %v1981, %v1980
          %v1994 = vpack.c.b16 %v1983, %v1982
          %v1995 = vpack.c.b16 %v1985, %v1984
          %v1996 = vpack.c.b16 %v1987, %v1986
          %v1997 = vpack.c.b16 %v1989, %v1988
          %2006 = vmatprep.subr.bf16.mxu0 0
          %2007 = vmatpush1.bf16.msra.mxu0 %v1990
          %2008 = vmatprep.subr.bf16.mxu0 0
          %2009 = vmatpush1.bf16.msra.mxu0 %v1991
          %2010 = vmatprep.subr.bf16.mxu0 0
          %2011 = vmatpush1.bf16.msra.mxu0 %v1992
          %2012 = vmatprep.subr.bf16.mxu0 0
          %2013 = vmatpush1.bf16.msra.mxu0 %v1993
          %2014 = vmatprep.subr.bf16.mxu0 0
          %2015 = vmatpush1.bf16.msra.mxu0 %v1994
          %2016 = vmatprep.subr.bf16.mxu0 0
          %2017 = vmatpush1.bf16.msra.mxu0 %v1995
          %2018 = vmatprep.subr.bf16.mxu0 0
          %2019 = vmatpush1.bf16.msra.mxu0 %v1996
          %2020 = vmatprep.subr.bf16.mxu0 0
          %2021 = vmatpush1.bf16.msra.mxu0 %v1997
          %2022 = vmatprep.subr.bf16.mxu0 0
          %2023 = vmatpush1.bf16.msra.mxu0 0
          %2024 = vmatprep.subr.bf16.mxu0 0
          %2025 = vmatpush1.bf16.msra.mxu0 0
          %2026 = vmatprep.subr.bf16.mxu0 0
          %2027 = vmatpush1.bf16.msra.mxu0 0
          %2028 = vmatprep.subr.bf16.mxu0 0
          %2029 = vmatpush1.bf16.msra.mxu0 0
          %2030 = vmatprep.subr.bf16.mxu0 0
          %2031 = vmatpush1.bf16.msra.mxu0 0
          %2032 = vmatprep.subr.bf16.mxu0 0
          %2033 = vmatpush1.bf16.msra.mxu0 0
          %2034 = vmatprep.subr.bf16.mxu0 0
          %2035 = vmatpush1.bf16.msra.mxu0 0
          %2036 = vmatprep.subr.bf16.mxu0 0
          %2037 = vmatpush1.bf16.msra.mxu0 0
          %2038 = vmatprep.mubr.bf16.mxu0 0
          %2039 = vmatmul.mubr.bf16.gmra.mrb[0].mxu0 %v1941
          %v2040 = vpop.f32.mrb[0].mxu0
          %v2041 = vadd.f32 0.0, %v2040
          %v2042 = vpop.f32.mrb[0].mxu0
          %v2043 = vpop.f32.mrb[0].mxu0
          %v2044 = vpop.f32.mrb[0].mxu0
          %2045 = vdwg.mxu0
          %v2046 = vmul.f32 %v1668, %v2041
          %s2047 = sshra.s32 %s1212, 3
          %s2048 = sand.u32 %s1212, 7
          %s2049 = sshra.s32 %s1212, 3
          %s2050 = sand.u32 %s1212, 7
          %s2051 = smul.u32 %s2047, 4
          %s2052 = smul.u32 %s2051, 8
          %s2053 = sadd.s32 %s2052, %s2050
          %s2054 = scalar_lea.vmem [#allocation5], %s2053
          %v2055 = vld [vmem:[%s2054] ss:$8 sm:$0xf]
          %v2057 = vlaneseq
          %v2058 = vshrl.u32 %v2057, 7
          %v2059 = vsub.s32 0, %v2058
          %v2060 = vrot.slane %v2055, %v2059
          %v2061 = vlaneseq
          %v2062 = vshrl.u32 %v2061, 7
          %v2063 = vsub.s32 1, %v2062
          %v2064 = vrot.slane %v2055, %v2063
          %v2065 = vlaneseq
          %v2066 = vshrl.u32 %v2065, 7
          %v2067 = vsub.s32 2, %v2066
          %v2068 = vrot.slane %v2055, %v2067
          %v2069 = vlaneseq
          %v2070 = vshrl.u32 %v2069, 7
          %v2071 = vsub.s32 3, %v2070
          %v2072 = vrot.slane %v2055, %v2071
          %v2077 = vadd.f32 %v1616, %v2060
          %v2078 = vadd.f32 %v1618, %v2064
          %v2079 = vadd.f32 %v1657, %v2068
          %v2080 = vadd.f32 %v1659, %v2072
          %v2081 = vpack.c.bf16 %v2046, %v2046
          %v2082 = vld [vmem:[#allocation18] sm:$0xff]
          %v2083 = vld [vmem:[#allocation18 + $0x8] sm:$0xff]
          %v2084 = vld [vmem:[#allocation18 + $0x10] sm:$0xff]
          %v2085 = vld [vmem:[#allocation18 + $0x18] sm:$0xff]
          %v2086 = vld [vmem:[#allocation18 + $0x20] sm:$0xff]
          %v2087 = vld [vmem:[#allocation18 + $0x28] sm:$0xff]
          %v2088 = vld [vmem:[#allocation18 + $0x30] sm:$0xff]
          %v2089 = vld [vmem:[#allocation18 + $0x38] sm:$0xff]
          %v2090 = vld [vmem:[#allocation18 + $0x40] sm:$0xff]
          %v2091 = vld [vmem:[#allocation18 + $0x48] sm:$0xff]
          %v2092 = vld [vmem:[#allocation18 + $0x50] sm:$0xff]
          %v2093 = vld [vmem:[#allocation18 + $0x58] sm:$0xff]
          %v2094 = vld [vmem:[#allocation18 + $0x60] sm:$0xff]
          %v2095 = vld [vmem:[#allocation18 + $0x68] sm:$0xff]
          %v2096 = vld [vmem:[#allocation18 + $0x70] sm:$0xff]
          %v2097 = vld [vmem:[#allocation18 + $0x78] sm:$0xff]
          %v2098 = vld [vmem:[#allocation18 + $0x80] sm:$0xff]
          %v2099 = vld [vmem:[#allocation18 + $0x88] sm:$0xff]
          %v2100 = vld [vmem:[#allocation18 + $0x90] sm:$0xff]
          %v2101 = vld [vmem:[#allocation18 + $0x98] sm:$0xff]
          %v2102 = vld [vmem:[#allocation18 + $0xa0] sm:$0xff]
          %v2103 = vld [vmem:[#allocation18 + $0xa8] sm:$0xff]
          %v2104 = vld [vmem:[#allocation18 + $0xb0] sm:$0xff]
          %v2105 = vld [vmem:[#allocation18 + $0xb8] sm:$0xff]
          %v2106 = vld [vmem:[#allocation18 + $0xc0] sm:$0xff]
          %v2107 = vld [vmem:[#allocation18 + $0xc8] sm:$0xff]
          %v2108 = vld [vmem:[#allocation18 + $0xd0] sm:$0xff]
          %v2109 = vld [vmem:[#allocation18 + $0xd8] sm:$0xff]
          %v2110 = vld [vmem:[#allocation18 + $0xe0] sm:$0xff]
          %v2111 = vld [vmem:[#allocation18 + $0xe8] sm:$0xff]
          %v2112 = vld [vmem:[#allocation18 + $0xf0] sm:$0xff]
          %v2113 = vld [vmem:[#allocation18 + $0xf8] sm:$0xff]
          %v2146 = vunpack.c.l.b16 %v2082
          %v2147 = vunpack.c.h.b16 %v2082
          %v2148 = vunpack.c.l.b16 %v2083
          %v2149 = vunpack.c.h.b16 %v2083
          %v2150 = vunpack.c.l.b16 %v2084
          %v2151 = vunpack.c.h.b16 %v2084
          %v2152 = vunpack.c.l.b16 %v2085
          %v2153 = vunpack.c.h.b16 %v2085
          %v2154 = vunpack.c.l.b16 %v2086
          %v2155 = vunpack.c.h.b16 %v2086
          %v2156 = vunpack.c.l.b16 %v2087
          %v2157 = vunpack.c.h.b16 %v2087
          %v2158 = vunpack.c.l.b16 %v2088
          %v2159 = vunpack.c.h.b16 %v2088
          %v2160 = vunpack.c.l.b16 %v2089
          %v2161 = vunpack.c.h.b16 %v2089
          %v2162 = vunpack.c.l.b16 %v2090
          %v2163 = vunpack.c.h.b16 %v2090
          %v2164 = vunpack.c.l.b16 %v2091
          %v2165 = vunpack.c.h.b16 %v2091
          %v2166 = vunpack.c.l.b16 %v2092
          %v2167 = vunpack.c.h.b16 %v2092
          %v2168 = vunpack.c.l.b16 %v2093
          %v2169 = vunpack.c.h.b16 %v2093
          %v2170 = vunpack.c.l.b16 %v2094
          %v2171 = vunpack.c.h.b16 %v2094
          %v2172 = vunpack.c.l.b16 %v2095
          %v2173 = vunpack.c.h.b16 %v2095
          %v2174 = vunpack.c.l.b16 %v2096
          %v2175 = vunpack.c.h.b16 %v2096
          %v2176 = vunpack.c.l.b16 %v2097
          %v2177 = vunpack.c.h.b16 %v2097
          %v2178 = vunpack.c.l.b16 %v2098
          %v2179 = vunpack.c.h.b16 %v2098
          %v2180 = vunpack.c.l.b16 %v2099
          %v2181 = vunpack.c.h.b16 %v2099
          %v2182 = vunpack.c.l.b16 %v2100
          %v2183 = vunpack.c.h.b16 %v2100
          %v2184 = vunpack.c.l.b16 %v2101
          %v2185 = vunpack.c.h.b16 %v2101
          %v2186 = vunpack.c.l.b16 %v2102
          %v2187 = vunpack.c.h.b16 %v2102
          %v2188 = vunpack.c.l.b16 %v2103
          %v2189 = vunpack.c.h.b16 %v2103
          %v2190 = vunpack.c.l.b16 %v2104
          %v2191 = vunpack.c.h.b16 %v2104
          %v2192 = vunpack.c.l.b16 %v2105
          %v2193 = vunpack.c.h.b16 %v2105
          %v2194 = vunpack.c.l.b16 %v2106
          %v2195 = vunpack.c.h.b16 %v2106
          %v2196 = vunpack.c.l.b16 %v2107
          %v2197 = vunpack.c.h.b16 %v2107
          %v2198 = vunpack.c.l.b16 %v2108
          %v2199 = vunpack.c.h.b16 %v2108
          %v2200 = vunpack.c.l.b16 %v2109
          %v2201 = vunpack.c.h.b16 %v2109
          %v2202 = vunpack.c.l.b16 %v2110
          %v2203 = vunpack.c.h.b16 %v2110
          %v2204 = vunpack.c.l.b16 %v2111
          %v2205 = vunpack.c.h.b16 %v2111
          %v2206 = vunpack.c.l.b16 %v2112
          %v2207 = vunpack.c.h.b16 %v2112
          %v2208 = vunpack.c.l.b16 %v2113
          %v2209 = vunpack.c.h.b16 %v2113
          %v2210 = vpack.c.b16 %v2150, %v2146
          %v2211 = vpack.c.b16 %v2151, %v2147
          %v2212 = vpack.c.b16 %v2152, %v2148
          %v2213 = vpack.c.b16 %v2153, %v2149
          %v2214 = vpack.c.b16 %v2158, %v2154
          %v2215 = vpack.c.b16 %v2159, %v2155
          %v2216 = vpack.c.b16 %v2160, %v2156
          %v2217 = vpack.c.b16 %v2161, %v2157
          %v2218 = vpack.c.b16 %v2166, %v2162
          %v2219 = vpack.c.b16 %v2167, %v2163
          %v2220 = vpack.c.b16 %v2168, %v2164
          %v2221 = vpack.c.b16 %v2169, %v2165
          %v2222 = vpack.c.b16 %v2174, %v2170
          %v2223 = vpack.c.b16 %v2175, %v2171
          %v2224 = vpack.c.b16 %v2176, %v2172
          %v2225 = vpack.c.b16 %v2177, %v2173
          %v2226 = vpack.c.b16 %v2182, %v2178
          %v2227 = vpack.c.b16 %v2183, %v2179
          %v2228 = vpack.c.b16 %v2184, %v2180
          %v2229 = vpack.c.b16 %v2185, %v2181
          %v2230 = vpack.c.b16 %v2190, %v2186
          %v2231 = vpack.c.b16 %v2191, %v2187
          %v2232 = vpack.c.b16 %v2192, %v2188
          %v2233 = vpack.c.b16 %v2193, %v2189
          %v2234 = vpack.c.b16 %v2198, %v2194
          %v2235 = vpack.c.b16 %v2199, %v2195
          %v2236 = vpack.c.b16 %v2200, %v2196
          %v2237 = vpack.c.b16 %v2201, %v2197
          %v2238 = vpack.c.b16 %v2206, %v2202
          %v2239 = vpack.c.b16 %v2207, %v2203
          %v2240 = vpack.c.b16 %v2208, %v2204
          %v2241 = vpack.c.b16 %v2209, %v2205
          %2274 = vmatprep.subr.bf16.mxu0 %v2211
          %2275 = vmatpush1.bf16.msra.mxu0 %v2210
          %2276 = vmatprep.subr.bf16.mxu0 %v2215
          %2277 = vmatpush1.bf16.msra.mxu0 %v2214
          %2278 = vmatprep.subr.bf16.mxu0 %v2219
          %2279 = vmatpush1.bf16.msra.mxu0 %v2218
          %2280 = vmatprep.subr.bf16.mxu0 %v2223
          %2281 = vmatpush1.bf16.msra.mxu0 %v2222
          %2282 = vmatprep.subr.bf16.mxu0 %v2227
          %2283 = vmatpush1.bf16.msra.mxu0 %v2226
          %2284 = vmatprep.subr.bf16.mxu0 %v2231
          %2285 = vmatpush1.bf16.msra.mxu0 %v2230
          %2286 = vmatprep.subr.bf16.mxu0 %v2235
          %2287 = vmatpush1.bf16.msra.mxu0 %v2234
          %2288 = vmatprep.subr.bf16.mxu0 %v2239
          %2289 = vmatpush1.bf16.msra.mxu0 %v2238
          %2290 = vmatprep.subr.bf16.mxu0 0
          %2291 = vmatpush1.bf16.msra.mxu0 0
          %2292 = vmatprep.subr.bf16.mxu0 0
          %2293 = vmatpush1.bf16.msra.mxu0 0
          %2294 = vmatprep.subr.bf16.mxu0 0
          %2295 = vmatpush1.bf16.msra.mxu0 0
          %2296 = vmatprep.subr.bf16.mxu0 0
          %2297 = vmatpush1.bf16.msra.mxu0 0
          %2298 = vmatprep.subr.bf16.mxu0 0
          %2299 = vmatpush1.bf16.msra.mxu0 0
          %2300 = vmatprep.subr.bf16.mxu0 0
          %2301 = vmatpush1.bf16.msra.mxu0 0
          %2302 = vmatprep.subr.bf16.mxu0 0
          %2303 = vmatpush1.bf16.msra.mxu0 0
          %2304 = vmatprep.subr.bf16.mxu0 0
          %2305 = vmatpush1.bf16.msra.mxu0 0
          %2306 = vmatprep.mubr.bf16.mxu0 0
          %2307 = vmatmul.mubr.bf16.gmra.mrb[0].mxu0 %v2081
          %v2308 = vpop.f32.mrb[0].mxu0
          %v2309 = vadd.f32 0.0, %v2308
          %v2310 = vpop.f32.mrb[0].mxu0
          %v2311 = vadd.f32 0.0, %v2310
          %v2312 = vpop.f32.mrb[0].mxu0
          %v2313 = vpop.f32.mrb[0].mxu0
          %2314 = vdwg.mxu0
          %2315 = vmatprep.subr.bf16.mxu0 %v2213
          %2316 = vmatpush1.bf16.msra.mxu0 %v2212
          %2317 = vmatprep.subr.bf16.mxu0 %v2217
          %2318 = vmatpush1.bf16.msra.mxu0 %v2216
          %2319 = vmatprep.subr.bf16.mxu0 %v2221
          %2320 = vmatpush1.bf16.msra.mxu0 %v2220
          %2321 = vmatprep.subr.bf16.mxu0 %v2225
          %2322 = vmatpush1.bf16.msra.mxu0 %v2224
          %2323 = vmatprep.subr.bf16.mxu0 %v2229
          %2324 = vmatpush1.bf16.msra.mxu0 %v2228
          %2325 = vmatprep.subr.bf16.mxu0 %v2233
          %2326 = vmatpush1.bf16.msra.mxu0 %v2232
          %2327 = vmatprep.subr.bf16.mxu0 %v2237
          %2328 = vmatpush1.bf16.msra.mxu0 %v2236
          %2329 = vmatprep.subr.bf16.mxu0 %v2241
          %2330 = vmatpush1.bf16.msra.mxu0 %v2240
          %2331 = vmatprep.subr.bf16.mxu0 0
          %2332 = vmatpush1.bf16.msra.mxu0 0
          %2333 = vmatprep.subr.bf16.mxu0 0
          %2334 = vmatpush1.bf16.msra.mxu0 0
          %2335 = vmatprep.subr.bf16.mxu0 0
          %2336 = vmatpush1.bf16.msra.mxu0 0
          %2337 = vmatprep.subr.bf16.mxu0 0
          %2338 = vmatpush1.bf16.msra.mxu0 0
          %2339 = vmatprep.subr.bf16.mxu0 0
          %2340 = vmatpush1.bf16.msra.mxu0 0
          %2341 = vmatprep.subr.bf16.mxu0 0
          %2342 = vmatpush1.bf16.msra.mxu0 0
          %2343 = vmatprep.subr.bf16.mxu0 0
          %2344 = vmatpush1.bf16.msra.mxu0 0
          %2345 = vmatprep.subr.bf16.mxu0 0
          %2346 = vmatpush1.bf16.msra.mxu0 0
          %2347 = vmatprep.mubr.bf16.mxu0 0
          %2348 = vmatmul.mubr.bf16.gmra.mrb[0].mxu0 %v2081
          %v2349 = vpop.f32.mrb[0].mxu0
          %v2350 = vadd.f32 0.0, %v2349
          %v2351 = vpop.f32.mrb[0].mxu0
          %v2352 = vadd.f32 0.0, %v2351
          %v2353 = vpop.f32.mrb[0].mxu0
          %v2354 = vpop.f32.mrb[0].mxu0
          %2355 = vdwg.mxu0
          %v2356 = vadd.f32 %v2077, %v2309
          %v2357 = vadd.f32 %v2078, %v2311
          %v2358 = vadd.f32 %v2079, %v2350
          %v2359 = vadd.f32 %v2080, %v2352
          %v2360 = vxor.u32 %v2356, 2147483648
          %v2361 = vmul.f32 %v2360, 1.442695
          %v2362 = vpow.pop %v2361
          %v2363 = vadd.f32 %v2362, 1.0
          %v2364 = vrcp.pop %v2363
          %v2365 = vmul.f32 1.0, %v2364
          %v2366 = vxor.u32 %v2357, 2147483648
          %v2367 = vmul.f32 %v2366, 1.442695
          %v2368 = vpow.pop %v2367
          %v2369 = vadd.f32 %v2368, 1.0
          %v2370 = vrcp.pop %v2369
          %v2371 = vmul.f32 1.0, %v2370
          %v2372 = vtanh.pop %v2358
          %v2373 = vxor.u32 %v2359, 2147483648
          %v2374 = vmul.f32 %v2373, 1.442695
          %v2375 = vpow.pop %v2374
          %v2376 = vadd.f32 %v2375, 1.0
          %v2377 = vrcp.pop %v2376
          %v2378 = vmul.f32 1.0, %v2377
          %v2379 = vmul.f32 %v2371, %v1218
          %v2380 = vmul.f32 %v2365, %v2372
          %v2381 = vadd.f32 %v2379, %v2380
          %v2382 = vtanh.pop %v2381
          %v2383 = vmul.f32 %v2378, %v2382
          %s2384 = scalar_lea.vmem %s600, %s1212 [#allocation19]
          %2385 = vst [vmem:[%s2384] sm:$0x1] %v1940
          %s2386 = scalar_lea.vmem %s607, %s1212 [#allocation20]
          %2387 = vst [vmem:[%s2386] sm:$0x1] %v2383
          %2388 = vst [vmem:[#allocation2] sm:$0x1] %v2383
          %2389 = vst [vmem:[#allocation3] sm:$0x1] %v2381
        $region105: #{tpu_custom_call.1} parent=71 // loop_footer
          %s1216 = sadd.s32 1, %s1212
        $region106: #{tpu_custom_call.1} parent=71 // loop_footer_branch
          %1211 = sbr.rel target = $region102
        $region107: #{tpu_custom_call.1} parent=71 // loop_exit
          _
        %s2390 = sand.u32 %s333, 1
        %s2391 = scalar_lea.sflag [#allocation9], %s2390
        %s2392 = sand.u32 %s333, 1
        %s2393 = smul.addr %s2392, 8
        %s2394 = scalar_lea.vmem [#allocation19], %s2393
        %s2395 = sand.u32 %s359, 1
        %s2396 = scalar_lea.sflag [#allocation21], %s2395
        %s2397 = sand.u32 %s359, 1
        %s2398 = smul.addr %s2397, 8
        %s2399 = scalar_lea.vmem [#allocation20], %s2398
        // Predicated region
        $region108: #{tpu_custom_call.1} parent=71 // pred_check
          %p2400 = pneg %p343
        $region109: #{tpu_custom_call.1} parent=71 // pred_check_branch
          %2402 = sbr.rel (%p2400) target = $region111
        $region110: #{tpu_custom_call.1} parent=71 // pred_region
          %s2404 = ssub.s32 128, 128
          %2405 = vsyncadd %s2391, %s2404
          %s2406 = smul.addr %s42, 8
          %s2407 = smul.addr %s2406, 16
          %s2408 = scalar_lea.hbm %s13, %s2407
          %s2409 = sshll.u32 %s2394, 4
          %s2410 = int_to_ptr.vmem [resolvable:$true] %s2409
          %2415 = dma.vmem_to_hbm [thread:$0]  %s2410, 128, %s2408, %s2391, 16, 16, 1
        $region111: #{tpu_custom_call.1} parent=71 // pred_fallthru
          _
        // Predicated region
        $region112: #{tpu_custom_call.1} parent=71 // pred_check
          %p2416 = pneg %p369
        $region113: #{tpu_custom_call.1} parent=71 // pred_check_branch
          %2418 = sbr.rel (%p2416) target = $region115
        $region114: #{tpu_custom_call.1} parent=71 // pred_region
          %s2420 = ssub.s32 128, 128
          %2421 = vsyncadd %s2396, %s2420
          %s2422 = smul.addr %s42, 8
          %s2423 = smul.addr %s2422, 16
          %s2424 = scalar_lea.hbm %s14, %s2423
          %s2425 = sshll.u32 %s2399, 4
          %s2426 = int_to_ptr.vmem [resolvable:$true] %s2425
          %2431 = dma.vmem_to_hbm [thread:$0]  %s2426, 128, %s2424, %s2396, 16, 16, 1
        $region115: #{tpu_custom_call.1} parent=71 // pred_fallthru
          _
      $region72: #{tpu_custom_call.1} parent=5 // pred_fallthru
        _
      %p2432 = scmp.le.s32.totalorder 2, %s37
      // Predicated region
      $region116: #{tpu_custom_call.1} parent=5 // pred_check
        %p2433 = pneg %p2432
      $region117: #{tpu_custom_call.1} parent=5 // pred_check_branch
        %2435 = sbr.rel (%p2433) target = $region119
      $region118: #{tpu_custom_call.1} parent=5 // pred_region
        %s2436 = ssub.s32 %s37, 2
        // Predicated region
        $region120: #{tpu_custom_call.1} parent=118 // pred_check
          %p2437 = pneg %p349
        $region121: #{tpu_custom_call.1} parent=118 // pred_check_branch
          %2439 = sbr.rel (%p2437) target = $region123
        $region122: #{tpu_custom_call.1} parent=118 // pred_region
          %s2440 = sand.u32 %s334, 1
          %s2441 = scalar_lea.sflag [#allocation9], %s2440
          %s2442 = sand.u32 %s334, 1
          %s2443 = smul.addr %s2442, 8
          %s2444 = scalar_lea.vmem [#allocation19], %s2443
          %2445 = dma.done %s2441, 128
        $region123: #{tpu_custom_call.1} parent=118 // pred_fallthru
          _
        // Predicated region
        $region124: #{tpu_custom_call.1} parent=118 // pred_check
          %p2446 = pneg %p375
        $region125: #{tpu_custom_call.1} parent=118 // pred_check_branch
          %2448 = sbr.rel (%p2446) target = $region127
        $region126: #{tpu_custom_call.1} parent=118 // pred_region
          %s2449 = sand.u32 %s360, 1
          %s2450 = scalar_lea.sflag [#allocation21], %s2449
          %s2451 = sand.u32 %s360, 1
          %s2452 = smul.addr %s2451, 8
          %s2453 = scalar_lea.vmem [#allocation20], %s2452
          %2454 = dma.done %s2450, 128
        $region127: #{tpu_custom_call.1} parent=118 // pred_fallthru
          _
      $region119: #{tpu_custom_call.1} parent=5 // pred_fallthru
        _
    $region6: #{tpu_custom_call.1} parent=1 // loop_footer
      %s41 = sadd.s32 1, %s37
    $region7: #{tpu_custom_call.1} parent=1 // loop_footer_branch
      %36 = sbr.rel target = $region3
    $region8: #{tpu_custom_call.1} parent=1 // loop_exit
      _
    %2455 = vsyncpa [#allocation8], 1
    %s2456 = scalar_lea.sflag [#allocation8], 1
    %2457 = vsyncpa %s2456, 1
    %2458 = vsyncpa [#allocation11], 1
    %s2459 = scalar_lea.sflag [#allocation11], 1
    %2460 = vsyncpa %s2459, 1
    %2461 = vsyncpa [#allocation14], 1
    %2462 = vsyncpa [#allocation17], 1
    %2463 = vsyncpa [#allocation9], 1
    %s2464 = scalar_lea.sflag [#allocation9], 1
    %2465 = vsyncpa %s2464, 1
    %2466 = vsyncpa [#allocation21], 1
    %s2467 = scalar_lea.sflag [#allocation21], 1
    %2468 = vsyncpa %s2467, 1

</llo_original>
